<compile_context>
chip_gen: v5e
topology: v5e:2x2
jax: 0.10.0
libtpu: 0.0.40
codegen_flags: <defaults>
</compile_context>

<pallas_src>
import functools

import jax
import jax.numpy as jnp
from jax.experimental import pallas as pl
from jax.experimental.pallas import tpu as pltpu


def _round_up(x, m):
    return ((x + m - 1) // m) * m


def attn_mil_kernel(h_ref, w1x_ref, wct_ref, b1_ref, w2_ref, b2_ref, bc_ref,
                    yprob_ref, yhat_ref, s_ref, m_ref, l_ref,
                    m_sc, l_sc, acc_sc, *, n_valid, fold_classifier):
    i = pl.program_id(0)
    tn = h_ref.shape[0]          # instances per tile
    d = b1_ref.shape[1]          # attention hidden dim D

    @pl.when(i == 0)
    def _init():
        m_sc[...] = jnp.full_like(m_sc, -jnp.inf)
        l_sc[...] = jnp.zeros_like(l_sc)
        acc_sc[...] = jnp.zeros_like(acc_sc)

    h = h_ref[...]                                               # (TN, L), bf16/f32

    if fold_classifier:
        # Fused first matmul: H @ [w1 | wc] -> (TN, D + K), f32 accumulation.
        hw = jnp.dot(h, w1x_ref[...], preferred_element_type=jnp.float32)
        hidden = jnp.tanh(hw[:, :d] + b1_ref[...])               # (TN, D)
        h_c = hw[:, d:]                                          # (TN, K) == (H @ Wc) tile
    else:
        # D already fills whole 128-lane tiles: keep the MXU output at D lanes
        # and do the K==1 classifier projection on the VPU/XLU instead.
        hw = jnp.dot(h, w1x_ref[...], preferred_element_type=jnp.float32)
        hidden = jnp.tanh(hw + b1_ref[...])                      # (TN, D)
        prod = (h * wct_ref[...]).astype(jnp.float32)            # (TN, L)
        h_c = jnp.sum(prod, axis=1, keepdims=True)               # (TN, 1) == H @ wc

    scores = jnp.dot(hidden, w2_ref[...],
                     preferred_element_type=jnp.float32) + b2_ref[...]   # (TN, K)
    s_t = scores.T                                               # (K, TN)

    # Mask padded instances (rows >= n_valid) to -inf so they vanish from the
    # softmax and the classifier accumulation.
    col = i * tn + jax.lax.broadcasted_iota(jnp.int32, s_t.shape, 1)
    s_t = jnp.where(col < n_valid, s_t, -jnp.inf)

    # Stream the raw (masked) scores out: full-block, lane-dense store; they are
    # normalized to A in the wrapper epilogue.
    s_ref[...] = s_t

    # Online softmax over instances + streaming classifier accumulation.
    m_prev = m_sc[...]                                           # (K, 1)
    m_new = jnp.maximum(m_prev, jnp.max(s_t, axis=1, keepdims=True))
    alpha = jnp.exp(m_prev - m_new)                              # (K, 1)
    p_t = jnp.exp(s_t - m_new)                                   # (K, TN)
    l_sc[...] = alpha * l_sc[...] + jnp.sum(p_t, axis=1, keepdims=True)
    # acc[k, j] = sum_n exp(s[n,k] - m_k) * (H @ Wc)[n, j]
    acc_sc[...] = alpha * acc_sc[...] + jnp.dot(
        p_t, h_c, preferred_element_type=jnp.float32)            # (K, K)
    m_sc[...] = m_new

    @pl.when(i == pl.num_programs(0) - 1)
    def _finalize():
        inv_l = pl.reciprocal(l_sc[...], approx=False)           # (K, 1)
        # logits = A @ (H @ Wc) + bc  ==  (A @ H) @ Wc + bc
        logits = acc_sc[...] * inv_l + bc_ref[...]               # (K, K)
        y_prob = jax.nn.sigmoid(logits)
        yprob_ref[...] = y_prob.astype(yprob_ref.dtype)
        yhat_ref[...] = (y_prob >= 0.5).astype(yhat_ref.dtype)
        m_ref[...] = m_sc[...]
        l_ref[...] = l_sc[...]


def _block_spec(shape, index_map, buffers=None):
    """BlockSpec with an optional pipeline-depth hint (graceful fallback)."""
    if buffers is not None and hasattr(pl, "Buffered"):
        try:
            return pl.BlockSpec(shape, index_map, pipeline_mode=pl.Buffered(buffers))
        except (TypeError, ValueError):
            pass
    return pl.BlockSpec(shape, index_map)


def attn_mil_forward(x, params, *, block_n=512, compute_dtype=jnp.bfloat16):
    """x: (1, N, L) like the PyTorch module; returns (Y_prob, Y_hat, A)."""
    H = jnp.squeeze(x, axis=0)                                   # (N, L)
    N, L = H.shape
    D = params["w1"].shape[1]
    K = params["w2"].shape[1]
    cdt = H.dtype if compute_dtype is None else jnp.dtype(compute_dtype)

    assert block_n % 128 == 0, "block_n must be a multiple of 128"
    block_n = min(block_n, _round_up(N, 128))
    n_pad = _round_up(N, block_n)
    grid = (n_pad // block_n,)

    # Fold wc into the first matmul only when the extra K columns stay inside
    # the same 128-lane tile as D (free on every MXU).  Otherwise (K == 1, D a
    # multiple of 128) the classifier projection runs on the VPU in-kernel.
    fold = (_round_up(D + K, 128) == _round_up(D, 128)) or K != 1

    if fold:
        w1x = jnp.concatenate([params["w1"], params["wc"]], axis=1).astype(cdt)
    else:
        w1x = params["w1"].astype(cdt)
    wct = params["wc"].T.astype(cdt)                             # (K, L)
    b1 = params["b1"].astype(jnp.float32)
    w2 = params["w2"].astype(jnp.float32)
    b2 = params["b2"].astype(jnp.float32)
    bc = params["bc"].astype(jnp.float32)

    h_in = H
    if n_pad != N:
        h_in = jnp.pad(H, ((0, n_pad - N), (0, 0)))
    h_in = h_in.astype(cdt)

    kernel = functools.partial(attn_mil_kernel, n_valid=N, fold_classifier=fold)

    out_shapes = (
        jax.ShapeDtypeStruct((K, K), jnp.float32),       # Y_prob
        jax.ShapeDtypeStruct((K, K), jnp.float32),       # Y_hat
        jax.ShapeDtypeStruct((K, n_pad), jnp.float32),   # raw attention scores
        jax.ShapeDtypeStruct((K, 1), jnp.float32),       # softmax running max
        jax.ShapeDtypeStruct((K, 1), jnp.float32),       # softmax denominator
    )

    w_cols = w1x.shape[1]
    cdt_size = jnp.dtype(cdt).itemsize
    # Generous VMEM budget: streamed H buffers + resident weights + in-kernel
    # f32 temporaries; capped well under v7x's 64 MiB physical VMEM.
    vmem_est = (3 * block_n * L * cdt_size
                + 2 * L * max(w_cols, 128) * cdt_size
                + 3 * block_n * (L + max(D + K, 128)) * 4
                + (2 << 20))
    vmem_limit = int(min(max(vmem_est, 8 << 20), 40 << 20))

    cost = pl.CostEstimate(
        flops=(2 * n_pad * L * w_cols + 2 * n_pad * D * K + 2 * n_pad * K * K
               + (0 if fold else 2 * n_pad * L * K)),
        transcendentals=n_pad * D + 3 * n_pad * K + 2 * K * K,
        bytes_accessed=int(n_pad * L * cdt_size
                           + (w1x.size + wct.size) * cdt_size
                           + (b1.size + w2.size + b2.size + bc.size) * 4
                           + (K * n_pad + 2 * K * K + 2 * K) * 4),
    )

    def _call(with_hints):
        def bs(shape, index_map, bufs):
            return _block_spec(shape, index_map, bufs if with_hints else None)

        grid_spec = pltpu.PrefetchScalarGridSpec(
            num_scalar_prefetch=0,
            grid=grid,
            in_specs=[
                bs((block_n, L), lambda i: (i, 0), 3),    # H tiles (deep stream)
                bs((L, w_cols), lambda i: (0, 0), 1),     # w1 (| wc), resident
                bs((K, L), lambda i: (0, 0), 1),          # wc^T, resident
                bs((1, D), lambda i: (0, 0), 1),          # b1
                bs((D, K), lambda i: (0, 0), 1),          # w2
                bs((1, K), lambda i: (0, 0), 1),          # b2
                bs((1, K), lambda i: (0, 0), 1),          # bc
            ],
            out_specs=(
                pl.BlockSpec((K, K), lambda i: (0, 0)),        # Y_prob (resident)
                pl.BlockSpec((K, K), lambda i: (0, 0)),        # Y_hat  (resident)
                pl.BlockSpec((K, block_n), lambda i: (0, i)),  # scores, streamed out
                pl.BlockSpec((K, 1), lambda i: (0, 0)),        # m
                pl.BlockSpec((K, 1), lambda i: (0, 0)),        # l
            ),
            scratch_shapes=[
                pltpu.VMEM((K, 1), jnp.float32),   # running max  m
                pltpu.VMEM((K, 1), jnp.float32),   # running denom l
                pltpu.VMEM((K, K), jnp.float32),   # running logits accumulator
            ],
        )
        return pl.pallas_call(
            kernel,
            out_shape=out_shapes,
            grid_spec=grid_spec,
            compiler_params=pltpu.CompilerParams(
                dimension_semantics=("arbitrary",),   # N axis carries softmax state
                vmem_limit_bytes=vmem_limit),
            cost_estimate=cost,
        )(h_in, w1x, wct, b1, w2, b2, bc)

    try:
        y_prob, y_hat, s_raw, m, l = _call(with_hints=True)
    except Exception:
        # Fall back to default double-buffering if this JAX/Mosaic build
        # rejects BlockSpec pipeline_mode hints.
        y_prob, y_hat, s_raw, m, l = _call(with_hints=False)

    # A-normalization epilogue in plain XLA (tiny (K, N) op): keeps the last
    # grid step free of an O(N) serial exp + un-overlapped writeback tail.
    attn = jnp.exp(s_raw[:, :N] - m) / l
    return y_prob, y_hat, attn


def init_params(key, L, D, K):
    """Deterministic init mimicking nn.Linear default (uniform +/- 1/sqrt(fan_in))."""
    ks = jax.random.split(key, 6)

    def lin(kw, kb, fan_in, fan_out):
        bound = 1.0 / jnp.sqrt(fan_in)
        w = jax.random.uniform(kw, (fan_in, fan_out), jnp.float32, -bound, bound)
        b = jax.random.uniform(kb, (1, fan_out), jnp.float32, -bound, bound)
        return w, b

    w1, b1 = lin(ks[0], ks[1], L, D)   # attention[0]: Linear(L, D)
    w2, b2 = lin(ks[2], ks[3], D, K)   # attention[2]: Linear(D, K)
    wc, bc = lin(ks[4], ks[5], L, K)   # classifier[0]: Linear(L, K)
    return {"w1": w1, "b1": b1, "w2": w2, "b2": b2, "wc": wc, "bc": bc}


def attn_mil_reference(x, params):
    """Pure-JAX reference for correctness check (mirrors the PyTorch module)."""
    H = jnp.squeeze(x, axis=0)
    hidden = jnp.tanh(H @ params["w1"] + params["b1"])
    scores = hidden @ params["w2"] + params["b2"]
    attn = jax.nn.softmax(scores.T, axis=1)
    M = attn @ H
    y_prob = jax.nn.sigmoid(M @ params["wc"] + params["bc"])
    y_hat = (y_prob >= 0.5).astype(jnp.float32)
    return y_prob, y_hat, attn


if __name__ == "__main__":
    key = jax.random.PRNGKey(0)

    # Config A: folded-classifier path, N NOT a multiple of block_n (exercises
    # pad + mask), full f32 -> tight check against the reference.
    N, L, D, K = 640, 128, 32, 1
    k_x, k_p, key = jax.random.split(key, 3)
    x = jax.random.normal(k_x, (1, N, L), dtype=jnp.float32)
    params = init_params(k_p, L, D, K)
    y_prob, y_hat, attn = attn_mil_forward(x, params, block_n=256,
                                           compute_dtype=jnp.float32)
    jax.block_until_ready((y_prob, y_hat, attn))
    yp_ref, yh_ref, a_ref = attn_mil_reference(x, params)
    assert y_prob.shape == (K, K) and attn.shape == (K, N)
    assert jnp.allclose(y_prob, yp_ref, atol=1e-5), "Y_prob mismatch (f32)"
    assert jnp.allclose(y_hat, yh_ref), "Y_hat mismatch (f32)"
    assert jnp.allclose(attn, a_ref, atol=1e-5, rtol=1e-4), "A mismatch (f32)"

    # Config B: module-default-like D=128 (classifier un-folded, VPU path) with
    # bf16 streamed operands and f32 accumulation -> looser tolerances.
    N2, L2, D2, K2 = 384, 256, 128, 1
    k_x2, k_p2, key = jax.random.split(key, 3)
    x2 = jax.random.normal(k_x2, (1, N2, L2), dtype=jnp.float32)
    params2 = init_params(k_p2, L2, D2, K2)
    y_prob2, y_hat2, attn2 = attn_mil_forward(x2, params2, block_n=256,
                                              compute_dtype=jnp.bfloat16)
    jax.block_until_ready((y_prob2, y_hat2, attn2))
    yp_ref2, yh_ref2, a_ref2 = attn_mil_reference(x2, params2)
    assert jnp.allclose(y_prob2, yp_ref2, atol=1e-2), "Y_prob mismatch (bf16)"
    assert jnp.allclose(attn2, a_ref2, atol=1e-3, rtol=1e-1), "A mismatch (bf16)"
    # Y_hat must be the >=0.5 threshold of the kernel's own Y_prob (bf16 can
    # legitimately flip the threshold vs. the f32 reference when logit ~ 0).
    assert jnp.array_equal(y_hat2, (y_prob2 >= 0.5).astype(jnp.float32))

    print("KERNEL_OK")
</pallas_src>

<mosaic_0001>
module attributes {stable_mosaic.version = 11 : i64} {
  func.func @attn_mil_kernel(%arg0: i32, %arg1: memref<256x128xf32, #tpu.memory_space<vmem>>, %arg2: memref<128x33xf32, #tpu.memory_space<vmem>>, %arg3: memref<1x128xf32, #tpu.memory_space<vmem>>, %arg4: memref<1x32xf32, #tpu.memory_space<vmem>>, %arg5: memref<32x1xf32, #tpu.memory_space<vmem>>, %arg6: memref<1x1xf32, #tpu.memory_space<vmem>>, %arg7: memref<1x1xf32, #tpu.memory_space<vmem>>, %arg8: memref<1x1xf32, #tpu.memory_space<vmem>>, %arg9: memref<1x1xf32, #tpu.memory_space<vmem>>, %arg10: memref<1x256xf32, #tpu.memory_space<vmem>>, %arg11: memref<1x1xf32, #tpu.memory_space<vmem>>, %arg12: memref<1x1xf32, #tpu.memory_space<vmem>>, %arg13: memref<1x1xf32, #tpu.memory_space<vmem>>, %arg14: memref<1x1xf32, #tpu.memory_space<vmem>>, %arg15: memref<1x1xf32, #tpu.memory_space<vmem>>) attributes {dimension_semantics = [#tpu.dimension_semantics<arbitrary>], iteration_bounds = array<i64: 3>, scalar_prefetch = 0 : i64, scratch_operands = 3 : i64, tpu.core_type = #tpu.core_type<tc>, window_params = [{transform_indices = @transform_0, window_bounds = array<i64: 256, 128>}, {pipeline_mode = #tpu.pipeline_mode<synchronous>, transform_indices = @transform_1, window_bounds = array<i64: 128, 33>}, {pipeline_mode = #tpu.pipeline_mode<synchronous>, transform_indices = @transform_2, window_bounds = array<i64: 1, 128>}, {pipeline_mode = #tpu.pipeline_mode<synchronous>, transform_indices = @transform_3, window_bounds = array<i64: 1, 32>}, {pipeline_mode = #tpu.pipeline_mode<synchronous>, transform_indices = @transform_4, window_bounds = array<i64: 32, 1>}, {pipeline_mode = #tpu.pipeline_mode<synchronous>, transform_indices = @transform_5, window_bounds = array<i64: 1, 1>}, {pipeline_mode = #tpu.pipeline_mode<synchronous>, transform_indices = @transform_6, window_bounds = array<i64: 1, 1>}, {pipeline_mode = #tpu.pipeline_mode<synchronous>, transform_indices = @transform_7, window_bounds = array<i64: 1, 1>}, {pipeline_mode = #tpu.pipeline_mode<synchronous>, transform_indices = @transform_8, window_bounds = array<i64: 1, 1>}, {transform_indices = @transform_9, window_bounds = array<i64: 1, 256>}, {pipeline_mode = #tpu.pipeline_mode<synchronous>, transform_indices = @transform_10, window_bounds = array<i64: 1, 1>}, {pipeline_mode = #tpu.pipeline_mode<synchronous>, transform_indices = @transform_11, window_bounds = array<i64: 1, 1>}]} {
    %c0_i32 = arith.constant 0 : i32
    %0 = arith.cmpi eq, %arg0, %c0_i32 : i32
    %1 = arith.extui %0 : i1 to i32
    %c0_i32_0 = arith.constant 0 : i32
    %2 = arith.cmpi ne, %1, %c0_i32_0 : i32
    scf.if %2 {
      %cst_30 = arith.constant 0xFF800000 : f32
      %51 = vector.broadcast %cst_30 : f32 to vector<1x1xf32>
      %c0_31 = arith.constant 0 : index
      %c0_32 = arith.constant 0 : index
      %52 = vector.load %arg13[%c0_31, %c0_32] : memref<1x1xf32, #tpu.memory_space<vmem>>, vector<1x1xf32>
      tpu.vector_store %arg13[%c0_31, %c0_32], %51 {strides = array<i32>} : memref<1x1xf32, #tpu.memory_space<vmem>>, vector<1x1xf32>,
      %cst_33 = arith.constant 0.000000e+00 : f32
      %53 = vector.broadcast %cst_33 : f32 to vector<1x1xf32>
      %c0_34 = arith.constant 0 : index
      %c0_35 = arith.constant 0 : index
      %54 = vector.load %arg14[%c0_34, %c0_35] : memref<1x1xf32, #tpu.memory_space<vmem>>, vector<1x1xf32>
      tpu.vector_store %arg14[%c0_34, %c0_35], %53 {strides = array<i32>} : memref<1x1xf32, #tpu.memory_space<vmem>>, vector<1x1xf32>,
      %cst_36 = arith.constant 0.000000e+00 : f32
      %55 = vector.broadcast %cst_36 : f32 to vector<1x1xf32>
      %c0_37 = arith.constant 0 : index
      %c0_38 = arith.constant 0 : index
      %56 = vector.load %arg15[%c0_37, %c0_38] : memref<1x1xf32, #tpu.memory_space<vmem>>, vector<1x1xf32>
      tpu.vector_store %arg15[%c0_37, %c0_38], %55 {strides = array<i32>} : memref<1x1xf32, #tpu.memory_space<vmem>>, vector<1x1xf32>,
    } else {
    }
    %c0 = arith.constant 0 : index
    %c0_1 = arith.constant 0 : index
    %3 = vector.load %arg1[%c0, %c0_1] : memref<256x128xf32, #tpu.memory_space<vmem>>, vector<256x128xf32>
    %c0_2 = arith.constant 0 : index
    %c0_3 = arith.constant 0 : index
    %4 = vector.load %arg2[%c0_2, %c0_3] : memref<128x33xf32, #tpu.memory_space<vmem>>, vector<128x33xf32>
    %cst = arith.constant dense<0.000000e+00> : vector<256x33xf32>
    %5 = tpu.matmul %3, %4, %cst {dimension_numbers = #tpu.dot_dimension_numbers<[1], [0], [0], [1], [0, 0, 1, 1], [], []>} : vector<256x128xf32>, vector<128x33xf32>, vector<256x33xf32> -> vector<256x33xf32>
    %6 = vector.extract_strided_slice %5 {offsets = [0, 0], sizes = [256, 32], strides = [1, 1]} : vector<256x33xf32> to vector<256x32xf32>
    %c0_4 = arith.constant 0 : index
    %c0_5 = arith.constant 0 : index
    %7 = vector.load %arg4[%c0_4, %c0_5] : memref<1x32xf32, #tpu.memory_space<vmem>>, vector<1x32xf32>
    %8 = vector.broadcast %7 : vector<1x32xf32> to vector<256x32xf32>
    %9 = arith.addf %6, %8 : vector<256x32xf32>
    %10 = math.tanh %9 : vector<256x32xf32>
    %11 = vector.extract_strided_slice %5 {offsets = [0, 32], sizes = [256, 1], strides = [1, 1]} : vector<256x33xf32> to vector<256x1xf32>
    %c0_6 = arith.constant 0 : index
    %c0_7 = arith.constant 0 : index
    %12 = vector.load %arg5[%c0_6, %c0_7] : memref<32x1xf32, #tpu.memory_space<vmem>>, vector<32x1xf32>
    %cst_8 = arith.constant dense<0.000000e+00> : vector<256x1xf32>
    %13 = tpu.matmul %10, %12, %cst_8 {dimension_numbers = #tpu.dot_dimension_numbers<[1], [0], [0], [1], [0, 0, 1, 1], [], []>} : vector<256x32xf32>, vector<32x1xf32>, vector<256x1xf32> -> vector<256x1xf32>
    %c0_9 = arith.constant 0 : index
    %c0_10 = arith.constant 0 : index
    %14 = vector.load %arg6[%c0_9, %c0_10] : memref<1x1xf32, #tpu.memory_space<vmem>>, vector<1x1xf32>
    %15 = vector.broadcast %14 : vector<1x1xf32> to vector<256x1xf32>
    %16 = arith.addf %13, %15 : vector<256x1xf32>
    %17 = tpu.transpose %16, [1, 0] : vector<256x1xf32> -> vector<1x256xf32>
    %c256_i32 = arith.constant 256 : i32
    %18 = arith.muli %arg0, %c256_i32 : i32
    %19 = tpu.iota {dimensions = array<i32: 1>} : vector<1x256xi32>
    %20 = vector.broadcast %18 : i32 to vector<1x256xi32>
    %21 = arith.addi %20, %19 : vector<1x256xi32>
    %c640_i32 = arith.constant 640 : i32
    %22 = vector.broadcast %c640_i32 : i32 to vector<1x256xi32>
    %23 = arith.cmpi slt, %21, %22 : vector<1x256xi32>
    %cst_11 = arith.constant 0xFF800000 : f32
    %24 = vector.broadcast %cst_11 : f32 to vector<1x256xf32>
    %25 = arith.select %23, %17, %24 : vector<1x256xi1>, vector<1x256xf32>
    %c0_12 = arith.constant 0 : index
    %c0_13 = arith.constant 0 : index
    %26 = vector.load %arg10[%c0_12, %c0_13] : memref<1x256xf32, #tpu.memory_space<vmem>>, vector<1x256xf32>
    tpu.vector_store %arg10[%c0_12, %c0_13], %25 {strides = array<i32>} : memref<1x256xf32, #tpu.memory_space<vmem>>, vector<1x256xf32>,
    %c0_14 = arith.constant 0 : index
    %c0_15 = arith.constant 0 : index
    %27 = vector.load %arg13[%c0_14, %c0_15] : memref<1x1xf32, #tpu.memory_space<vmem>>, vector<1x1xf32>
    %cst_16 = arith.constant dense<0xFF800000> : vector<1xf32>
    %28 = vector.multi_reduction <maximumf>, %25, %cst_16 [1] : vector<1x256xf32> to vector<1xf32>
    %29 = vector.shape_cast %28 : vector<1xf32> to vector<1x1xf32>
    %30 = arith.maximumf %27, %29 : vector<1x1xf32>
    %31 = arith.subf %27, %30 : vector<1x1xf32>
    %32 = math.exp %31 : vector<1x1xf32>
    %33 = vector.broadcast %30 : vector<1x1xf32> to vector<1x256xf32>
    %34 = arith.subf %25, %33 : vector<1x256xf32>
    %35 = math.exp %34 : vector<1x256xf32>
    %c0_17 = arith.constant 0 : index
    %c0_18 = arith.constant 0 : index
    %36 = vector.load %arg14[%c0_17, %c0_18] : memref<1x1xf32, #tpu.memory_space<vmem>>, vector<1x1xf32>
    %37 = arith.mulf %32, %36 : vector<1x1xf32>
    %cst_19 = arith.constant dense<0.000000e+00> : vector<1xf32>
    %38 = vector.multi_reduction <add>, %35, %cst_19 [1] : vector<1x256xf32> to vector<1xf32>
    %39 = vector.shape_cast %38 : vector<1xf32> to vector<1x1xf32>
    %40 = arith.addf %37, %39 : vector<1x1xf32>
    %c0_20 = arith.constant 0 : index
    %c0_21 = arith.constant 0 : index
    %41 = vector.load %arg14[%c0_20, %c0_21] : memref<1x1xf32, #tpu.memory_space<vmem>>, vector<1x1xf32>
    tpu.vector_store %arg14[%c0_20, %c0_21], %40 {strides = array<i32>} : memref<1x1xf32, #tpu.memory_space<vmem>>, vector<1x1xf32>,
    %c0_22 = arith.constant 0 : index
    %c0_23 = arith.constant 0 : index
    %42 = vector.load %arg15[%c0_22, %c0_23] : memref<1x1xf32, #tpu.memory_space<vmem>>, vector<1x1xf32>
    %43 = arith.mulf %32, %42 : vector<1x1xf32>
    %cst_24 = arith.constant dense<0.000000e+00> : vector<1x1xf32>
    %44 = tpu.matmul %35, %11, %cst_24 {dimension_numbers = #tpu.dot_dimension_numbers<[1], [0], [0], [1], [0, 0, 1, 1], [], []>} : vector<1x256xf32>, vector<256x1xf32>, vector<1x1xf32> -> vector<1x1xf32>
    %45 = arith.addf %43, %44 : vector<1x1xf32>
    %c0_25 = arith.constant 0 : index
    %c0_26 = arith.constant 0 : index
    %46 = vector.load %arg15[%c0_25, %c0_26] : memref<1x1xf32, #tpu.memory_space<vmem>>, vector<1x1xf32>
    tpu.vector_store %arg15[%c0_25, %c0_26], %45 {strides = array<i32>} : memref<1x1xf32, #tpu.memory_space<vmem>>, vector<1x1xf32>,
    %c0_27 = arith.constant 0 : index
    %c0_28 = arith.constant 0 : index
    %47 = vector.load %arg13[%c0_27, %c0_28] : memref<1x1xf32, #tpu.memory_space<vmem>>, vector<1x1xf32>
    tpu.vector_store %arg13[%c0_27, %c0_28], %30 {strides = array<i32>} : memref<1x1xf32, #tpu.memory_space<vmem>>, vector<1x1xf32>,
    %c2_i32 = arith.constant 2 : i32
    %48 = arith.cmpi eq, %arg0, %c2_i32 : i32
    %49 = arith.extui %48 : i1 to i32
    %c0_i32_29 = arith.constant 0 : i32
    %50 = arith.cmpi ne, %49, %c0_i32_29 : i32
    scf.if %50 {
      %c0_30 = arith.constant 0 : index
      %c0_31 = arith.constant 0 : index
      %51 = vector.load %arg14[%c0_30, %c0_31] : memref<1x1xf32, #tpu.memory_space<vmem>>, vector<1x1xf32>
      %52 = tpu.reciprocal %51 : vector<1x1xf32> -> vector<1x1xf32>
      %c0_32 = arith.constant 0 : index
      %c0_33 = arith.constant 0 : index
      %53 = vector.load %arg15[%c0_32, %c0_33] : memref<1x1xf32, #tpu.memory_space<vmem>>, vector<1x1xf32>
      %54 = arith.mulf %53, %52 : vector<1x1xf32>
      %c0_34 = arith.constant 0 : index
      %c0_35 = arith.constant 0 : index
      %55 = vector.load %arg7[%c0_34, %c0_35] : memref<1x1xf32, #tpu.memory_space<vmem>>, vector<1x1xf32>
      %56 = arith.addf %54, %55 : vector<1x1xf32>
      %57 = arith.negf %56 : vector<1x1xf32>
      %58 = math.exp %57 : vector<1x1xf32>
      %cst_36 = arith.constant 1.000000e+00 : f32
      %59 = vector.broadcast %cst_36 : f32 to vector<1x1xf32>
      %60 = arith.addf %59, %58 : vector<1x1xf32>
      %61 = arith.divf %59, %60 : vector<1x1xf32>
      %c0_37 = arith.constant 0 : index
      %c0_38 = arith.constant 0 : index
      %62 = vector.load %arg8[%c0_37, %c0_38] : memref<1x1xf32, #tpu.memory_space<vmem>>, vector<1x1xf32>
      tpu.vector_store %arg8[%c0_37, %c0_38], %61 {strides = array<i32>} : memref<1x1xf32, #tpu.memory_space<vmem>>, vector<1x1xf32>,
      %cst_39 = arith.constant 5.000000e-01 : f32
      %63 = vector.broadcast %cst_39 : f32 to vector<1x1xf32>
      %64 = arith.cmpf oge, %61, %63 : vector<1x1xf32>
      %65 = arith.extui %64 : vector<1x1xi1> to vector<1x1xi32>
      %66 = arith.sitofp %65 : vector<1x1xi32> to vector<1x1xf32>
      %c0_40 = arith.constant 0 : index
      %c0_41 = arith.constant 0 : index
      %67 = vector.load %arg9[%c0_40, %c0_41] : memref<1x1xf32, #tpu.memory_space<vmem>>, vector<1x1xf32>
      tpu.vector_store %arg9[%c0_40, %c0_41], %66 {strides = array<i32>} : memref<1x1xf32, #tpu.memory_space<vmem>>, vector<1x1xf32>,
      %c0_42 = arith.constant 0 : index
      %c0_43 = arith.constant 0 : index
      %68 = vector.load %arg13[%c0_42, %c0_43] : memref<1x1xf32, #tpu.memory_space<vmem>>, vector<1x1xf32>
      %c0_44 = arith.constant 0 : index
      %c0_45 = arith.constant 0 : index
      %69 = vector.load %arg11[%c0_44, %c0_45] : memref<1x1xf32, #tpu.memory_space<vmem>>, vector<1x1xf32>
      tpu.vector_store %arg11[%c0_44, %c0_45], %68 {strides = array<i32>} : memref<1x1xf32, #tpu.memory_space<vmem>>, vector<1x1xf32>,
      %c0_46 = arith.constant 0 : index
      %c0_47 = arith.constant 0 : index
      %70 = vector.load %arg14[%c0_46, %c0_47] : memref<1x1xf32, #tpu.memory_space<vmem>>, vector<1x1xf32>
      %c0_48 = arith.constant 0 : index
      %c0_49 = arith.constant 0 : index
      %71 = vector.load %arg12[%c0_48, %c0_49] : memref<1x1xf32, #tpu.memory_space<vmem>>, vector<1x1xf32>
      tpu.vector_store %arg12[%c0_48, %c0_49], %70 {strides = array<i32>} : memref<1x1xf32, #tpu.memory_space<vmem>>, vector<1x1xf32>,
    } else {
    }
    return
  }
  func.func @transform_0(%arg0: i32) -> (i32, i32) {
    %c0_i32 = arith.constant 0 : i32
    %c0_i32_0 = arith.constant 0 : i32
    return %arg0, %c0_i32 : i32, i32
  }
  func.func @transform_1(%arg0: i32) -> (i32, i32) {
    %c0_i32 = arith.constant 0 : i32
    %c0_i32_0 = arith.constant 0 : i32
    %c0_i32_1 = arith.constant 0 : i32
    return %c0_i32, %c0_i32_0 : i32, i32
  }
  func.func @transform_2(%arg0: i32) -> (i32, i32) {
    %c0_i32 = arith.constant 0 : i32
    %c0_i32_0 = arith.constant 0 : i32
    %c0_i32_1 = arith.constant 0 : i32
    return %c0_i32, %c0_i32_0 : i32, i32
  }
  func.func @transform_3(%arg0: i32) -> (i32, i32) {
    %c0_i32 = arith.constant 0 : i32
    %c0_i32_0 = arith.constant 0 : i32
    %c0_i32_1 = arith.constant 0 : i32
    return %c0_i32, %c0_i32_0 : i32, i32
  }
  func.func @transform_4(%arg0: i32) -> (i32, i32) {
    %c0_i32 = arith.constant 0 : i32
    %c0_i32_0 = arith.constant 0 : i32
    %c0_i32_1 = arith.constant 0 : i32
    return %c0_i32, %c0_i32_0 : i32, i32
  }
  func.func @transform_5(%arg0: i32) -> (i32, i32) {
    %c0_i32 = arith.constant 0 : i32
    %c0_i32_0 = arith.constant 0 : i32
    %c0_i32_1 = arith.constant 0 : i32
    return %c0_i32, %c0_i32_0 : i32, i32
  }
  func.func @transform_6(%arg0: i32) -> (i32, i32) {
    %c0_i32 = arith.constant 0 : i32
    %c0_i32_0 = arith.constant 0 : i32
    %c0_i32_1 = arith.constant 0 : i32
    return %c0_i32, %c0_i32_0 : i32, i32
  }
  func.func @transform_7(%arg0: i32) -> (i32, i32) {
    %c0_i32 = arith.constant 0 : i32
    %c0_i32_0 = arith.constant 0 : i32
    %c0_i32_1 = arith.constant 0 : i32
    return %c0_i32, %c0_i32_0 : i32, i32
  }
  func.func @transform_8(%arg0: i32) -> (i32, i32) {
    %c0_i32 = arith.constant 0 : i32
    %c0_i32_0 = arith.constant 0 : i32
    %c0_i32_1 = arith.constant 0 : i32
    return %c0_i32, %c0_i32_0 : i32, i32
  }
  func.func @transform_9(%arg0: i32) -> (i32, i32) {
    %c0_i32 = arith.constant 0 : i32
    %c0_i32_0 = arith.constant 0 : i32
    return %c0_i32, %arg0 : i32, i32
  }
  func.func @transform_10(%arg0: i32) -> (i32, i32) {
    %c0_i32 = arith.constant 0 : i32
    %c0_i32_0 = arith.constant 0 : i32
    %c0_i32_1 = arith.constant 0 : i32
    return %c0_i32, %c0_i32_0 : i32, i32
  }
  func.func @transform_11(%arg0: i32) -> (i32, i32) {
    %c0_i32 = arith.constant 0 : i32
    %c0_i32_0 = arith.constant 0 : i32
    %c0_i32_1 = arith.constant 0 : i32
    return %c0_i32, %c0_i32_0 : i32, i32
  }
}

</mosaic_0001>

<llo_original>
// kernel: tpu_custom_call.1
$region0: #{tpu_custom_call.1}
  #allocation0 [shape = 'u32[]', space=smem, size = 0x4, offset = 0x4, fixed_abs, tag = 'smem constant byte address 0x4 - core index']
  #allocation1 [shape = 'u32[72,128]{1,0:T(1,128)}', space=vmem, size = 0x9000, scoped, tag = 'internal scratch']
  #allocation2 [shape = 'f32[1,1]{1,0:T(1,128)}', space=vmem, size = 0x200, scoped, tag = 'scratch operand']
  #allocation3 [shape = 'f32[1,1]{1,0:T(1,128)}', space=vmem, size = 0x200, scoped, tag = 'scratch operand']
  #allocation4 [shape = 'f32[1,1]{1,0:T(1,128)}', space=vmem, size = 0x200, scoped, tag = 'scratch operand']
  #allocation5 [shape = 'f32[1,1]{1,0:T(1,128)S(1)}', space=vmem, size = 0x200, scoped, tag = 'scoped memory for tpu_custom_call.1']
  #allocation6 [shape = 'f32[1,1]{1,0:T(1,128)S(1)}', space=vmem, size = 0x200, scoped, tag = 'scoped memory for tpu_custom_call.1']
  %s0 = inlined_call_operand.hbm [shape: f32[768,128], index: 0, kind: input, shape index: {}]
  %s1 = inlined_call_operand.vmem [shape: f32[128,33], index: 1, kind: input, shape index: {}]
  %s2 = inlined_call_operand.vmem [shape: f32[1,128], index: 2, kind: input, shape index: {}]
  %s3 = inlined_call_operand.vmem [shape: f32[1,32], index: 3, kind: input, shape index: {}]
  %s4 = inlined_call_operand.vmem [shape: f32[32,1], index: 4, kind: input, shape index: {}]
  %s5 = inlined_call_operand.<no memory space> [shape: f32[1,1], index: 5, kind: input, shape index: {}]
  %s6 = inlined_call_operand.<no memory space> [shape: f32[1,1], index: 6, kind: input, shape index: {}]
  %s7 = inlined_call_operand.hbm [shape: f32[1,1], index: 7, kind: output, shape index: {0}]
  %s8 = inlined_call_operand.hbm [shape: f32[1,1], index: 8, kind: output, shape index: {1}]
  %s9 = inlined_call_operand.hbm [shape: f32[1,768], index: 9, kind: output, shape index: {2}]
  %s10 = inlined_call_operand.hbm [shape: f32[1,1], index: 10, kind: output, shape index: {3}]
  %s11 = inlined_call_operand.hbm [shape: f32[1,1], index: 11, kind: output, shape index: {4}]
  %12 = xla_tuple %s7, %s8, %s9, %s10, %s11
  %s13 = sld [smem:[#allocation0]]
  $region105: #{tpu_custom_call.1} parent=0
    _
  %s15 = ssub.s32 1, %s13
  %s16 = scalar_select 0, %s15, %s13
  %v17 = vstv %s5
  %18 = vst [vmem:[#allocation5] sm:$0x1] %v17
  %v19 = vstv %s6
  %20 = vst [vmem:[#allocation6] sm:$0x1] %v19
  $region1: #{tpu_custom_call.1} parent=0
    #allocation7 [shape = 'u8[262144]{0}', space=vmem, size = 0x40000, scoped, tag = 'input window, operand 0']
    #allocation8 [shape = 's32[2]{0}', space=sflag, size = 0x8, scoped, tag = 'scoped memory for tpu_custom_call.1']
    #allocation9 [shape = 's32[2]{0}', space=sflag, size = 0x8, scoped, tag = 'scoped memory for tpu_custom_call.1']
    #allocation10 [shape = 'u8[512]{0}', space=vmem, size = 0x400, scoped, tag = 'output window, operand 0, single buffered']
    #allocation11 [shape = 'u8[512]{0}', space=vmem, size = 0x400, scoped, tag = 'output window, operand 1, single buffered']
    #allocation12 [shape = 's32[1]{0}', space=sflag, size = 0x4, scoped, tag = 'scoped memory for tpu_custom_call.1']
    #allocation13 [shape = 'u8[2048]{0}', space=vmem, size = 0x800, scoped, tag = 'output window, operand 2']
    #allocation14 [shape = 'u8[512]{0}', space=vmem, size = 0x400, scoped, tag = 'output window, operand 3, single buffered']
    #allocation15 [shape = 'u8[512]{0}', space=vmem, size = 0x400, scoped, tag = 'output window, operand 4, single buffered']
    #allocation16 [shape = 's32[1]{0}', space=sflag, size = 0x4, scoped, tag = 'scoped memory for tpu_custom_call.1']
    %21 = vsyncpa [#allocation8], 0
    %s22 = scalar_lea.sflag [#allocation8], 1
    %23 = vsyncpa %s22, 0
    %24 = vsyncpa [#allocation9], 0
    %25 = vsyncpa [#allocation12], 0
    %26 = vsyncpa [#allocation16], 0
    loop: start=0, step=1, limit=5
    $region2: #{tpu_custom_call.1} parent=1 // loop_pre_header
      _
    $region3: #{tpu_custom_call.1} parent=1 // loop_header
      %s28 = sphi 0, %s32
      %p29 = scmp.ge.s32.totalorder %s28, 5
      %s38 = sphi 0, %s40
      %s41 = sphi 0, %s38
      %s42 = sphi 0, %s41
      %s58 = sphi 0, %s42
      %s62 = sphi 0, %s62
      %s64 = sphi 0, %s62
      %s65 = sphi 0, %s64
      %s79 = sphi 0, %s65
      %s83 = sphi 0, %s83
      %s85 = sphi 0, %s83
      %s86 = sphi 0, %s85
      %s100 = sphi 0, %s86
      %s104 = sphi 0, %s104
      %s106 = sphi 0, %s104
      %s107 = sphi 0, %s106
      %s121 = sphi 0, %s107
      %s125 = sphi 0, %s125
      %s127 = sphi 0, %s125
      %s128 = sphi 0, %s127
      %s142 = sphi 0, %s128
      %s146 = sphi 0, %s146
      %s148 = sphi 0, %s146
      %s149 = sphi 0, %s148
      %s163 = sphi 0, %s149
      %s167 = sphi 0, %s167
      %s169 = sphi 0, %s167
      %s170 = sphi 0, %s169
      %s184 = sphi 0, %s170
      %s188 = sphi 0, %s188
      %s190 = sphi 0, %s188
      %s191 = sphi 0, %s190
      %s205 = sphi 0, %s191
      %s209 = sphi 0, %s209
      %s211 = sphi 0, %s209
      %s212 = sphi 0, %s211
      %s226 = sphi 0, %s212
      %s232 = sphi 0, %s234
      %s235 = sphi 0, %s232
      %s236 = sphi 0, %s235
      %s252 = sphi 0, %s236
      %s256 = sphi 0, %s256
      %s258 = sphi 0, %s256
      %s259 = sphi 0, %s258
      %s273 = sphi 0, %s259
      %s277 = sphi 0, %s277
      %s279 = sphi 0, %s277
      %s280 = sphi 0, %s279
      %s294 = sphi 0, %s280
    $region4: #{tpu_custom_call.1} parent=1 // loop_header_branch
      %31 = sbr.rel (%p29) target = $region8
    $region5: #{tpu_custom_call.1} parent=1 // loop_body
      %s33 = ssub.s32 %s28, 1
      %s34 = ssub.s32 %s28, 2
      %s35 = sadd.s32 %s28, 1
      %s36 = ssub.s32 %s28, %s35
      %p37 = scmp.eq.s32.totalorder %s36, 0
      %s39 = sadd.s32 %s38, 1
      %s40 = scalar_select %p37, %s38, %s39
      %p43 = pneg %p37
      %p44 = scmp.eq.s32.totalorder %s28, 2
      %p45 = por %p43, %p44
      %p46 = scmp.ne.s32.totalorder %s38, %s41
      %p47 = scmp.eq.s32.totalorder %s28, 0
      %p48 = por %p46, %p47
      %p49 = scmp.ne.s32.totalorder %s38, %s41
      %p50 = scmp.eq.s32.totalorder %s33, 2
      %p51 = por %p49, %p50
      %p52 = scmp.ne.s32.totalorder %s41, %s42
      %p53 = scmp.eq.s32.totalorder %s33, 0
      %p54 = por %p52, %p53
      %p55 = scmp.ne.s32.totalorder %s41, %s42
      %p56 = scmp.eq.s32.totalorder %s34, 2
      %p57 = por %p55, %p56
      %p59 = scmp.ne.s32.totalorder %s42, %s58
      %p60 = scmp.eq.s32.totalorder %s34, 0
      %p61 = por %p59, %p60
      %s63 = sadd.s32 %s62, 1
      %p66 = scmp.eq.s32.totalorder %s28, 2
      %p67 = scmp.ne.s32.totalorder %s62, %s64
      %p68 = scmp.eq.s32.totalorder %s28, 0
      %p69 = por %p67, %p68
      %p70 = scmp.ne.s32.totalorder %s62, %s64
      %p71 = scmp.eq.s32.totalorder %s33, 2
      %p72 = por %p70, %p71
      %p73 = scmp.ne.s32.totalorder %s64, %s65
      %p74 = scmp.eq.s32.totalorder %s33, 0
      %p75 = por %p73, %p74
      %p76 = scmp.ne.s32.totalorder %s64, %s65
      %p77 = scmp.eq.s32.totalorder %s34, 2
      %p78 = por %p76, %p77
      %p80 = scmp.ne.s32.totalorder %s65, %s79
      %p81 = scmp.eq.s32.totalorder %s34, 0
      %p82 = por %p80, %p81
      %s84 = sadd.s32 %s83, 1
      %p87 = scmp.eq.s32.totalorder %s28, 2
      %p88 = scmp.ne.s32.totalorder %s83, %s85
      %p89 = scmp.eq.s32.totalorder %s28, 0
      %p90 = por %p88, %p89
      %p91 = scmp.ne.s32.totalorder %s83, %s85
      %p92 = scmp.eq.s32.totalorder %s33, 2
      %p93 = por %p91, %p92
      %p94 = scmp.ne.s32.totalorder %s85, %s86
      %p95 = scmp.eq.s32.totalorder %s33, 0
      %p96 = por %p94, %p95
      %p97 = scmp.ne.s32.totalorder %s85, %s86
      %p98 = scmp.eq.s32.totalorder %s34, 2
      %p99 = por %p97, %p98
      %p101 = scmp.ne.s32.totalorder %s86, %s100
      %p102 = scmp.eq.s32.totalorder %s34, 0
      %p103 = por %p101, %p102
      %s105 = sadd.s32 %s104, 1
      %p108 = scmp.eq.s32.totalorder %s28, 2
      %p109 = scmp.ne.s32.totalorder %s104, %s106
      %p110 = scmp.eq.s32.totalorder %s28, 0
      %p111 = por %p109, %p110
      %p112 = scmp.ne.s32.totalorder %s104, %s106
      %p113 = scmp.eq.s32.totalorder %s33, 2
      %p114 = por %p112, %p113
      %p115 = scmp.ne.s32.totalorder %s106, %s107
      %p116 = scmp.eq.s32.totalorder %s33, 0
      %p117 = por %p115, %p116
      %p118 = scmp.ne.s32.totalorder %s106, %s107
      %p119 = scmp.eq.s32.totalorder %s34, 2
      %p120 = por %p118, %p119
      %p122 = scmp.ne.s32.totalorder %s107, %s121
      %p123 = scmp.eq.s32.totalorder %s34, 0
      %p124 = por %p122, %p123
      %s126 = sadd.s32 %s125, 1
      %p129 = scmp.eq.s32.totalorder %s28, 2
      %p130 = scmp.ne.s32.totalorder %s125, %s127
      %p131 = scmp.eq.s32.totalorder %s28, 0
      %p132 = por %p130, %p131
      %p133 = scmp.ne.s32.totalorder %s125, %s127
      %p134 = scmp.eq.s32.totalorder %s33, 2
      %p135 = por %p133, %p134
      %p136 = scmp.ne.s32.totalorder %s127, %s128
      %p137 = scmp.eq.s32.totalorder %s33, 0
      %p138 = por %p136, %p137
      %p139 = scmp.ne.s32.totalorder %s127, %s128
      %p140 = scmp.eq.s32.totalorder %s34, 2
      %p141 = por %p139, %p140
      %p143 = scmp.ne.s32.totalorder %s128, %s142
      %p144 = scmp.eq.s32.totalorder %s34, 0
      %p145 = por %p143, %p144
      %s147 = sadd.s32 %s146, 1
      %p150 = scmp.eq.s32.totalorder %s28, 2
      %p151 = scmp.ne.s32.totalorder %s146, %s148
      %p152 = scmp.eq.s32.totalorder %s28, 0
      %p153 = por %p151, %p152
      %p154 = scmp.ne.s32.totalorder %s146, %s148
      %p155 = scmp.eq.s32.totalorder %s33, 2
      %p156 = por %p154, %p155
      %p157 = scmp.ne.s32.totalorder %s148, %s149
      %p158 = scmp.eq.s32.totalorder %s33, 0
      %p159 = por %p157, %p158
      %p160 = scmp.ne.s32.totalorder %s148, %s149
      %p161 = scmp.eq.s32.totalorder %s34, 2
      %p162 = por %p160, %p161
      %p164 = scmp.ne.s32.totalorder %s149, %s163
      %p165 = scmp.eq.s32.totalorder %s34, 0
      %p166 = por %p164, %p165
      %s168 = sadd.s32 %s167, 1
      %p171 = scmp.eq.s32.totalorder %s28, 2
      %p172 = scmp.ne.s32.totalorder %s167, %s169
      %p173 = scmp.eq.s32.totalorder %s28, 0
      %p174 = por %p172, %p173
      %p175 = scmp.ne.s32.totalorder %s167, %s169
      %p176 = scmp.eq.s32.totalorder %s33, 2
      %p177 = por %p175, %p176
      %p178 = scmp.ne.s32.totalorder %s169, %s170
      %p179 = scmp.eq.s32.totalorder %s33, 0
      %p180 = por %p178, %p179
      %p181 = scmp.ne.s32.totalorder %s169, %s170
      %p182 = scmp.eq.s32.totalorder %s34, 2
      %p183 = por %p181, %p182
      %p185 = scmp.ne.s32.totalorder %s170, %s184
      %p186 = scmp.eq.s32.totalorder %s34, 0
      %p187 = por %p185, %p186
      %s189 = sadd.s32 %s188, 1
      %p192 = scmp.eq.s32.totalorder %s28, 2
      %p193 = scmp.ne.s32.totalorder %s188, %s190
      %p194 = scmp.eq.s32.totalorder %s28, 0
      %p195 = por %p193, %p194
      %p196 = scmp.ne.s32.totalorder %s188, %s190
      %p197 = scmp.eq.s32.totalorder %s33, 2
      %p198 = por %p196, %p197
      %p199 = scmp.ne.s32.totalorder %s190, %s191
      %p200 = scmp.eq.s32.totalorder %s33, 0
      %p201 = por %p199, %p200
      %p202 = scmp.ne.s32.totalorder %s190, %s191
      %p203 = scmp.eq.s32.totalorder %s34, 2
      %p204 = por %p202, %p203
      %p206 = scmp.ne.s32.totalorder %s191, %s205
      %p207 = scmp.eq.s32.totalorder %s34, 0
      %p208 = por %p206, %p207
      %s210 = sadd.s32 %s209, 1
      %p213 = scmp.eq.s32.totalorder %s28, 2
      %p214 = scmp.ne.s32.totalorder %s209, %s211
      %p215 = scmp.eq.s32.totalorder %s28, 0
      %p216 = por %p214, %p215
      %p217 = scmp.ne.s32.totalorder %s209, %s211
      %p218 = scmp.eq.s32.totalorder %s33, 2
      %p219 = por %p217, %p218
      %p220 = scmp.ne.s32.totalorder %s211, %s212
      %p221 = scmp.eq.s32.totalorder %s33, 0
      %p222 = por %p220, %p221
      %p223 = scmp.ne.s32.totalorder %s211, %s212
      %p224 = scmp.eq.s32.totalorder %s34, 2
      %p225 = por %p223, %p224
      %p227 = scmp.ne.s32.totalorder %s212, %s226
      %p228 = scmp.eq.s32.totalorder %s34, 0
      %p229 = por %p227, %p228
      %s230 = ssub.s32 %s28, %s35
      %p231 = scmp.eq.s32.totalorder %s230, 0
      %s233 = sadd.s32 %s232, 1
      %s234 = scalar_select %p231, %s232, %s233
      %p237 = pneg %p231
      %p238 = scmp.eq.s32.totalorder %s28, 2
      %p239 = por %p237, %p238
      %p240 = scmp.ne.s32.totalorder %s232, %s235
      %p241 = scmp.eq.s32.totalorder %s28, 0
      %p242 = por %p240, %p241
      %p243 = scmp.ne.s32.totalorder %s232, %s235
      %p244 = scmp.eq.s32.totalorder %s33, 2
      %p245 = por %p243, %p244
      %p246 = scmp.ne.s32.totalorder %s235, %s236
      %p247 = scmp.eq.s32.totalorder %s33, 0
      %p248 = por %p246, %p247
      %p249 = scmp.ne.s32.totalorder %s235, %s236
      %p250 = scmp.eq.s32.totalorder %s34, 2
      %p251 = por %p249, %p250
      %p253 = scmp.ne.s32.totalorder %s236, %s252
      %p254 = scmp.eq.s32.totalorder %s34, 0
      %p255 = por %p253, %p254
      %s257 = sadd.s32 %s256, 1
      %p260 = scmp.eq.s32.totalorder %s28, 2
      %p261 = scmp.ne.s32.totalorder %s256, %s258
      %p262 = scmp.eq.s32.totalorder %s28, 0
      %p263 = por %p261, %p262
      %p264 = scmp.ne.s32.totalorder %s256, %s258
      %p265 = scmp.eq.s32.totalorder %s33, 2
      %p266 = por %p264, %p265
      %p267 = scmp.ne.s32.totalorder %s258, %s259
      %p268 = scmp.eq.s32.totalorder %s33, 0
      %p269 = por %p267, %p268
      %p270 = scmp.ne.s32.totalorder %s258, %s259
      %p271 = scmp.eq.s32.totalorder %s34, 2
      %p272 = por %p270, %p271
      %p274 = scmp.ne.s32.totalorder %s259, %s273
      %p275 = scmp.eq.s32.totalorder %s34, 0
      %p276 = por %p274, %p275
      %s278 = sadd.s32 %s277, 1
      %p281 = scmp.eq.s32.totalorder %s28, 2
      %p282 = scmp.ne.s32.totalorder %s277, %s279
      %p283 = scmp.eq.s32.totalorder %s28, 0
      %p284 = por %p282, %p283
      %p285 = scmp.ne.s32.totalorder %s277, %s279
      %p286 = scmp.eq.s32.totalorder %s33, 2
      %p287 = por %p285, %p286
      %p288 = scmp.ne.s32.totalorder %s279, %s280
      %p289 = scmp.eq.s32.totalorder %s33, 0
      %p290 = por %p288, %p289
      %p291 = scmp.ne.s32.totalorder %s279, %s280
      %p292 = scmp.eq.s32.totalorder %s34, 2
      %p293 = por %p291, %p292
      %p295 = scmp.ne.s32.totalorder %s280, %s294
      %p296 = scmp.eq.s32.totalorder %s34, 0
      %p297 = por %p295, %p296
      %p298 = scmp.le.s32.totalorder 1, %s28
      %p299 = scmp.lt.s32.totalorder %s28, 4
      %p300 = pnand %p298, %p299
      %p301 = pneg %p300
      // Predicated region
      $region9: #{tpu_custom_call.1} parent=5 // pred_check
        _
      $region10: #{tpu_custom_call.1} parent=5 // pred_check_branch
        %303 = sbr.rel (%p300) target = $region12
      $region11: #{tpu_custom_call.1} parent=5 // pred_region
        %s304 = ssub.s32 %s28, 1
        // Predicated region
        $region13: #{tpu_custom_call.1} parent=11 // pred_check
          %p305 = pneg %p75
        $region14: #{tpu_custom_call.1} parent=11 // pred_check_branch
          %307 = sbr.rel (%p305) target = $region16
        $region15: #{tpu_custom_call.1} parent=11 // pred_region
          _
        $region16: #{tpu_custom_call.1} parent=11 // pred_fallthru
          _
        // Predicated region
        $region17: #{tpu_custom_call.1} parent=11 // pred_check
          %p308 = pneg %p96
        $region18: #{tpu_custom_call.1} parent=11 // pred_check_branch
          %310 = sbr.rel (%p308) target = $region20
        $region19: #{tpu_custom_call.1} parent=11 // pred_region
          _
        $region20: #{tpu_custom_call.1} parent=11 // pred_fallthru
          _
        // Predicated region
        $region21: #{tpu_custom_call.1} parent=11 // pred_check
          %p311 = pneg %p117
        $region22: #{tpu_custom_call.1} parent=11 // pred_check_branch
          %313 = sbr.rel (%p311) target = $region24
        $region23: #{tpu_custom_call.1} parent=11 // pred_region
          _
        $region24: #{tpu_custom_call.1} parent=11 // pred_fallthru
          _
        // Predicated region
        $region25: #{tpu_custom_call.1} parent=11 // pred_check
          %p314 = pneg %p138
        $region26: #{tpu_custom_call.1} parent=11 // pred_check_branch
          %316 = sbr.rel (%p314) target = $region28
        $region27: #{tpu_custom_call.1} parent=11 // pred_region
          _
        $region28: #{tpu_custom_call.1} parent=11 // pred_fallthru
          _
        // Predicated region
        $region29: #{tpu_custom_call.1} parent=11 // pred_check
          %p317 = pneg %p159
        $region30: #{tpu_custom_call.1} parent=11 // pred_check_branch
          %319 = sbr.rel (%p317) target = $region32
        $region31: #{tpu_custom_call.1} parent=11 // pred_region
          _
        $region32: #{tpu_custom_call.1} parent=11 // pred_fallthru
          _
        // Predicated region
        $region33: #{tpu_custom_call.1} parent=11 // pred_check
          %p320 = pneg %p180
        $region34: #{tpu_custom_call.1} parent=11 // pred_check_branch
          %322 = sbr.rel (%p320) target = $region36
        $region35: #{tpu_custom_call.1} parent=11 // pred_region
          _
        $region36: #{tpu_custom_call.1} parent=11 // pred_fallthru
          _
      $region12: #{tpu_custom_call.1} parent=5 // pred_fallthru
        _
      %p323 = scmp.lt.s32.totalorder %s28, 3
      // Predicated region
      $region37: #{tpu_custom_call.1} parent=5 // pred_check
        %p324 = pneg %p323
      $region38: #{tpu_custom_call.1} parent=5 // pred_check_branch
        %326 = sbr.rel (%p324) target = $region40
      $region39: #{tpu_custom_call.1} parent=5 // pred_region
        // Predicated region
        $region41: #{tpu_custom_call.1} parent=39 // pred_check
          %p327 = pneg %p48
        $region42: #{tpu_custom_call.1} parent=39 // pred_check_branch
          %329 = sbr.rel (%p327) target = $region44
        $region43: #{tpu_custom_call.1} parent=39 // pred_region
          %s330 = sand.u32 %s38, 1
          %s331 = scalar_lea.sflag [#allocation8], %s330
          %s332 = sand.u32 %s38, 1
          %s333 = smul.addr %s332, 256
          %s334 = scalar_lea.vmem [#allocation7], %s333
          %s335 = smul.u32 32, %s28
          %337 = vsyncadd %s331, 0
          %s338 = smul.addr %s335, 8
          %s339 = scalar_lea.hbm %s0, %s338
          %s340 = sshll.u32 %s339, 4
          %s341 = int_to_ptr.hbm [resolvable:$true] %s340
          %s342 = sshll.u32 %s334, 4
          %s343 = int_to_ptr.vmem [resolvable:$true] %s342
          %348 = dma.hbm_to_vmem [thread:$0]  %s341, 4096, %s343, %s331, 128, 128, 8
        $region44: #{tpu_custom_call.1} parent=39 // pred_fallthru
          _
      $region40: #{tpu_custom_call.1} parent=5 // pred_fallthru
        _
      %p349 = scmp.le.s32.totalorder 1, %s28
      %p350 = scmp.lt.s32.totalorder %s28, 4
      %p351 = pnand %p349, %p350
      %p352 = pneg %p351
      // Predicated region
      $region45: #{tpu_custom_call.1} parent=5 // pred_check
        _
      $region46: #{tpu_custom_call.1} parent=5 // pred_check_branch
        %354 = sbr.rel (%p351) target = $region48
      $region47: #{tpu_custom_call.1} parent=5 // pred_region
        %s355 = ssub.s32 %s28, 1
        %s356 = sand.u32 %s41, 1
        %s357 = scalar_lea.sflag [#allocation8], %s356
        %s358 = sand.u32 %s41, 1
        %s359 = smul.addr %s358, 256
        %s360 = scalar_lea.vmem [#allocation7], %s359
        // Predicated region
        $region49: #{tpu_custom_call.1} parent=47 // pred_check
          %p361 = pneg %p54
        $region50: #{tpu_custom_call.1} parent=47 // pred_check_branch
          %363 = sbr.rel (%p361) target = $region52
        $region51: #{tpu_custom_call.1} parent=47 // pred_region
          %365 = dma.done %s357, 4096
        $region52: #{tpu_custom_call.1} parent=47 // pred_fallthru
          _
        %s366 = sand.u32 %s41, 1
        %s367 = scalar_lea.sflag [#allocation8], %s366
        %s368 = sand.u32 %s41, 1
        %s369 = smul.addr %s368, 256
        %s370 = scalar_lea.vmem [#allocation7], %s369
        %p371 = pneg %p54
        %p372 = pneg %p51
        %p373 = pneg %p75
        %p374 = pneg %p72
        %p375 = pneg %p96
        %p376 = pneg %p93
        %p377 = pneg %p117
        %p378 = pneg %p114
        %p379 = pneg %p138
        %p380 = pneg %p135
        %p381 = pneg %p159
        %p382 = pneg %p156
        %p383 = pneg %p180
        %p384 = pneg %p177
        %p385 = pneg %p201
        %p386 = pneg %p198
        %p387 = pneg %p222
        %p388 = pneg %p219
        %p389 = pneg %p248
        %p390 = pneg %p245
        %s391 = sand.u32 %s33, 1
        %s392 = scalar_lea.sflag [#allocation9], %s391
        %s393 = sand.u32 %s235, 1
        %s394 = smul.addr %s393, 2
        %s395 = scalar_lea.vmem [#allocation13], %s394
        %p396 = pneg %p269
        %p397 = pneg %p266
        %p398 = pneg %p290
        %p399 = pneg %p287
        %s400 = smul.u32 32, %s33
        %s401 = smul.u32 2, %s33
        %p402 = scmp.eq.s32.totalorder %s33, 0
        // Predicated region
        $region53: #{tpu_custom_call.1} parent=47 // pred_check
          %p403 = pneg %p402
        $region54: #{tpu_custom_call.1} parent=47 // pred_check_branch
          %405 = sbr.rel (%p403) target = $region56
        $region55: #{tpu_custom_call.1} parent=47 // pred_region
          %vm406 = vcmask 0
          %407 = vst.msk [vmem:[#allocation2] sm:$0x1] %vm406, -inf
          %408 = vst.msk [vmem:[#allocation3] sm:$0x1] %vm406, 0.0
          %409 = vst.msk [vmem:[#allocation4] sm:$0x1] %vm406, 0.0
        $region56: #{tpu_custom_call.1} parent=47 // pred_fallthru
          _
        %v410 = vld [vmem:[%s360] sm:$0xff]
        %v411 = vld [vmem:[%s360 + $0x8] sm:$0xff]
        %v412 = vld [vmem:[%s360 + $0x10] sm:$0xff]
        %v413 = vld [vmem:[%s360 + $0x18] sm:$0xff]
        %v414 = vld [vmem:[%s360 + $0x20] sm:$0xff]
        %v415 = vld [vmem:[%s360 + $0x28] sm:$0xff]
        %v416 = vld [vmem:[%s360 + $0x30] sm:$0xff]
        %v417 = vld [vmem:[%s360 + $0x38] sm:$0xff]
        %v418 = vld [vmem:[%s360 + $0x40] sm:$0xff]
        %v419 = vld [vmem:[%s360 + $0x48] sm:$0xff]
        %v420 = vld [vmem:[%s360 + $0x50] sm:$0xff]
        %v421 = vld [vmem:[%s360 + $0x58] sm:$0xff]
        %v422 = vld [vmem:[%s360 + $0x60] sm:$0xff]
        %v423 = vld [vmem:[%s360 + $0x68] sm:$0xff]
        %v424 = vld [vmem:[%s360 + $0x70] sm:$0xff]
        %v425 = vld [vmem:[%s360 + $0x78] sm:$0xff]
        %v426 = vld [vmem:[%s360 + $0x80] sm:$0xff]
        %v427 = vld [vmem:[%s360 + $0x88] sm:$0xff]
        %v428 = vld [vmem:[%s360 + $0x90] sm:$0xff]
        %v429 = vld [vmem:[%s360 + $0x98] sm:$0xff]
        %v430 = vld [vmem:[%s360 + $0xa0] sm:$0xff]
        %v431 = vld [vmem:[%s360 + $0xa8] sm:$0xff]
        %v432 = vld [vmem:[%s360 + $0xb0] sm:$0xff]
        %v433 = vld [vmem:[%s360 + $0xb8] sm:$0xff]
        %v434 = vld [vmem:[%s360 + $0xc0] sm:$0xff]
        %v435 = vld [vmem:[%s360 + $0xc8] sm:$0xff]
        %v436 = vld [vmem:[%s360 + $0xd0] sm:$0xff]
        %v437 = vld [vmem:[%s360 + $0xd8] sm:$0xff]
        %v438 = vld [vmem:[%s360 + $0xe0] sm:$0xff]
        %v439 = vld [vmem:[%s360 + $0xe8] sm:$0xff]
        %v440 = vld [vmem:[%s360 + $0xf0] sm:$0xff]
        %v441 = vld [vmem:[%s360 + $0xf8] sm:$0xff]
        %v442 = vld [vmem:[%s1] sm:$0xff]
        %v443 = vld [vmem:[%s1 + $0x8] sm:$0xff]
        %v444 = vld [vmem:[%s1 + $0x10] sm:$0xff]
        %v445 = vld [vmem:[%s1 + $0x18] sm:$0xff]
        %v446 = vld [vmem:[%s1 + $0x20] sm:$0xff]
        %v447 = vld [vmem:[%s1 + $0x28] sm:$0xff]
        %v448 = vld [vmem:[%s1 + $0x30] sm:$0xff]
        %v449 = vld [vmem:[%s1 + $0x38] sm:$0xff]
        %v450 = vld [vmem:[%s1 + $0x40] sm:$0xff]
        %v451 = vld [vmem:[%s1 + $0x48] sm:$0xff]
        %v452 = vld [vmem:[%s1 + $0x50] sm:$0xff]
        %v453 = vld [vmem:[%s1 + $0x58] sm:$0xff]
        %v454 = vld [vmem:[%s1 + $0x60] sm:$0xff]
        %v455 = vld [vmem:[%s1 + $0x68] sm:$0xff]
        %v456 = vld [vmem:[%s1 + $0x70] sm:$0xff]
        %v457 = vld [vmem:[%s1 + $0x78] sm:$0xff]
        %458 = vmatpush.msra.mxu0 %v457
        %459 = vmatpush.msra.mxu0 %v456
        %460 = vmatpush.msra.mxu0 %v455
        %461 = vmatpush.msra.mxu0 %v454
        %462 = vmatpush.msra.mxu0 %v453
        %463 = vmatpush.msra.mxu0 %v452
        %464 = vmatpush.msra.mxu0 %v451
        %465 = vmatpush.msra.mxu0 %v450
        %466 = vmatpush.msra.mxu0 %v449
        %467 = vmatpush.msra.mxu0 %v448
        %468 = vmatpush.msra.mxu0 %v447
        %469 = vmatpush.msra.mxu0 %v446
        %470 = vmatpush.msra.mxu0 %v445
        %471 = vmatpush.msra.mxu0 %v444
        %472 = vmatpush.msra.mxu0 %v443
        %473 = vmatpush.msra.mxu0 %v442
        %474 = vmatmul.f32.gmra.mxu0 %v410
        %v475 = vpop.f32.mrf.mxu0
        %v476 = vadd.f32 0.0, %v475
        %477 = vmatmul.f32.gmra.mxu0 %v411
        %v478 = vpop.f32.mrf.mxu0
        %v479 = vadd.f32 0.0, %v478
        %480 = vmatmul.f32.gmra.mxu0 %v412
        %v481 = vpop.f32.mrf.mxu0
        %v482 = vadd.f32 0.0, %v481
        %483 = vmatmul.f32.gmra.mxu0 %v413
        %v484 = vpop.f32.mrf.mxu0
        %v485 = vadd.f32 0.0, %v484
        %486 = vmatmul.f32.gmra.mxu0 %v414
        %v487 = vpop.f32.mrf.mxu0
        %v488 = vadd.f32 0.0, %v487
        %489 = vmatmul.f32.gmra.mxu0 %v415
        %v490 = vpop.f32.mrf.mxu0
        %v491 = vadd.f32 0.0, %v490
        %492 = vmatmul.f32.gmra.mxu0 %v416
        %v493 = vpop.f32.mrf.mxu0
        %v494 = vadd.f32 0.0, %v493
        %495 = vmatmul.f32.gmra.mxu0 %v417
        %v496 = vpop.f32.mrf.mxu0
        %v497 = vadd.f32 0.0, %v496
        %498 = vmatmul.f32.gmra.mxu0 %v418
        %v499 = vpop.f32.mrf.mxu0
        %v500 = vadd.f32 0.0, %v499
        %501 = vmatmul.f32.gmra.mxu0 %v419
        %v502 = vpop.f32.mrf.mxu0
        %v503 = vadd.f32 0.0, %v502
        %504 = vmatmul.f32.gmra.mxu0 %v420
        %v505 = vpop.f32.mrf.mxu0
        %v506 = vadd.f32 0.0, %v505
        %507 = vmatmul.f32.gmra.mxu0 %v421
        %v508 = vpop.f32.mrf.mxu0
        %v509 = vadd.f32 0.0, %v508
        %510 = vmatmul.f32.gmra.mxu0 %v422
        %v511 = vpop.f32.mrf.mxu0
        %v512 = vadd.f32 0.0, %v511
        %513 = vmatmul.f32.gmra.mxu0 %v423
        %v514 = vpop.f32.mrf.mxu0
        %v515 = vadd.f32 0.0, %v514
        %516 = vmatmul.f32.gmra.mxu0 %v424
        %v517 = vpop.f32.mrf.mxu0
        %v518 = vadd.f32 0.0, %v517
        %519 = vmatmul.f32.gmra.mxu0 %v425
        %v520 = vpop.f32.mrf.mxu0
        %v521 = vadd.f32 0.0, %v520
        %522 = vmatmul.f32.gmra.mxu0 %v426
        %v523 = vpop.f32.mrf.mxu0
        %v524 = vadd.f32 0.0, %v523
        %525 = vmatmul.f32.gmra.mxu0 %v427
        %v526 = vpop.f32.mrf.mxu0
        %v527 = vadd.f32 0.0, %v526
        %528 = vmatmul.f32.gmra.mxu0 %v428
        %v529 = vpop.f32.mrf.mxu0
        %v530 = vadd.f32 0.0, %v529
        %531 = vmatmul.f32.gmra.mxu0 %v429
        %v532 = vpop.f32.mrf.mxu0
        %v533 = vadd.f32 0.0, %v532
        %534 = vmatmul.f32.gmra.mxu0 %v430
        %v535 = vpop.f32.mrf.mxu0
        %v536 = vadd.f32 0.0, %v535
        %537 = vmatmul.f32.gmra.mxu0 %v431
        %v538 = vpop.f32.mrf.mxu0
        %v539 = vadd.f32 0.0, %v538
        %540 = vmatmul.f32.gmra.mxu0 %v432
        %v541 = vpop.f32.mrf.mxu0
        %v542 = vadd.f32 0.0, %v541
        %543 = vmatmul.f32.gmra.mxu0 %v433
        %v544 = vpop.f32.mrf.mxu0
        %v545 = vadd.f32 0.0, %v544
        %546 = vmatmul.f32.gmra.mxu0 %v434
        %v547 = vpop.f32.mrf.mxu0
        %v548 = vadd.f32 0.0, %v547
        %549 = vmatmul.f32.gmra.mxu0 %v435
        %v550 = vpop.f32.mrf.mxu0
        %v551 = vadd.f32 0.0, %v550
        %552 = vmatmul.f32.gmra.mxu0 %v436
        %v553 = vpop.f32.mrf.mxu0
        %v554 = vadd.f32 0.0, %v553
        %555 = vmatmul.f32.gmra.mxu0 %v437
        %v556 = vpop.f32.mrf.mxu0
        %v557 = vadd.f32 0.0, %v556
        %558 = vmatmul.f32.gmra.mxu0 %v438
        %v559 = vpop.f32.mrf.mxu0
        %v560 = vadd.f32 0.0, %v559
        %561 = vmatmul.f32.gmra.mxu0 %v439
        %v562 = vpop.f32.mrf.mxu0
        %v563 = vadd.f32 0.0, %v562
        %564 = vmatmul.f32.gmra.mxu0 %v440
        %v565 = vpop.f32.mrf.mxu0
        %v566 = vadd.f32 0.0, %v565
        %567 = vmatmul.f32.gmra.mxu0 %v441
        %v568 = vpop.f32.mrf.mxu0
        %v569 = vadd.f32 0.0, %v568
        %570 = vdwg.mxu0
        %v571 = vld [vmem:[%s3] sm:$0x1]
        %v573 = vperm.slane %v571, 0
        %v575 = vadd.f32 %v476, %v573
        %v576 = vadd.f32 %v479, %v573
        %v577 = vadd.f32 %v482, %v573
        %v578 = vadd.f32 %v485, %v573
        %v579 = vadd.f32 %v488, %v573
        %v580 = vadd.f32 %v491, %v573
        %v581 = vadd.f32 %v494, %v573
        %v582 = vadd.f32 %v497, %v573
        %v583 = vadd.f32 %v500, %v573
        %v584 = vadd.f32 %v503, %v573
        %v585 = vadd.f32 %v506, %v573
        %v586 = vadd.f32 %v509, %v573
        %v587 = vadd.f32 %v512, %v573
        %v588 = vadd.f32 %v515, %v573
        %v589 = vadd.f32 %v518, %v573
        %v590 = vadd.f32 %v521, %v573
        %v591 = vadd.f32 %v524, %v573
        %v592 = vadd.f32 %v527, %v573
        %v593 = vadd.f32 %v530, %v573
        %v594 = vadd.f32 %v533, %v573
        %v595 = vadd.f32 %v536, %v573
        %v596 = vadd.f32 %v539, %v573
        %v597 = vadd.f32 %v542, %v573
        %v598 = vadd.f32 %v545, %v573
        %v599 = vadd.f32 %v548, %v573
        %v600 = vadd.f32 %v551, %v573
        %v601 = vadd.f32 %v554, %v573
        %v602 = vadd.f32 %v557, %v573
        %v603 = vadd.f32 %v560, %v573
        %v604 = vadd.f32 %v563, %v573
        %v605 = vadd.f32 %v566, %v573
        %v606 = vadd.f32 %v569, %v573
        %v607 = vtanh.pop %v575
        %v608 = vtanh.pop %v576
        %v609 = vtanh.pop %v577
        %v610 = vtanh.pop %v578
        %v611 = vtanh.pop %v579
        %v612 = vtanh.pop %v580
        %v613 = vtanh.pop %v581
        %v614 = vtanh.pop %v582
        %v615 = vtanh.pop %v583
        %v616 = vtanh.pop %v584
        %v617 = vtanh.pop %v585
        %v618 = vtanh.pop %v586
        %v619 = vtanh.pop %v587
        %v620 = vtanh.pop %v588
        %v621 = vtanh.pop %v589
        %v622 = vtanh.pop %v590
        %v623 = vtanh.pop %v591
        %v624 = vtanh.pop %v592
        %v625 = vtanh.pop %v593
        %v626 = vtanh.pop %v594
        %v627 = vtanh.pop %v595
        %v628 = vtanh.pop %v596
        %v629 = vtanh.pop %v597
        %v630 = vtanh.pop %v598
        %v631 = vtanh.pop %v599
        %v632 = vtanh.pop %v600
        %v633 = vtanh.pop %v601
        %v634 = vtanh.pop %v602
        %v635 = vtanh.pop %v603
        %v636 = vtanh.pop %v604
        %v637 = vtanh.pop %v605
        %v638 = vtanh.pop %v606
        %v639 = vld [vmem:[%s4] sm:$0xff]
        %v640 = vld [vmem:[%s4 + $0x8] sm:$0xff]
        %v641 = vld [vmem:[%s4 + $0x10] sm:$0xff]
        %v642 = vld [vmem:[%s4 + $0x18] sm:$0xff]
        %v643 = vld [vmem:[#allocation5] sm:$0x1]
        %v645 = vperm.slane %v643, 0
        %vm647 = vcmask 261120
        %v649 = vsel %vm647, %v607, 0
        %v652 = vsel %vm647, %v608, 0
        %v655 = vsel %vm647, %v609, 0
        %v658 = vsel %vm647, %v610, 0
        %v661 = vsel %vm647, %v611, 0
        %v664 = vsel %vm647, %v612, 0
        %v667 = vsel %vm647, %v613, 0
        %v670 = vsel %vm647, %v614, 0
        %v673 = vsel %vm647, %v615, 0
        %v676 = vsel %vm647, %v616, 0
        %v679 = vsel %vm647, %v617, 0
        %v682 = vsel %vm647, %v618, 0
        %v685 = vsel %vm647, %v619, 0
        %v688 = vsel %vm647, %v620, 0
        %v691 = vsel %vm647, %v621, 0
        %v694 = vsel %vm647, %v622, 0
        %v697 = vsel %vm647, %v623, 0
        %v700 = vsel %vm647, %v624, 0
        %v703 = vsel %vm647, %v625, 0
        %v706 = vsel %vm647, %v626, 0
        %v709 = vsel %vm647, %v627, 0
        %v712 = vsel %vm647, %v628, 0
        %v715 = vsel %vm647, %v629, 0
        %v718 = vsel %vm647, %v630, 0
        %v721 = vsel %vm647, %v631, 0
        %v724 = vsel %vm647, %v632, 0
        %v727 = vsel %vm647, %v633, 0
        %v730 = vsel %vm647, %v634, 0
        %v733 = vsel %vm647, %v635, 0
        %v736 = vsel %vm647, %v636, 0
        %v739 = vsel %vm647, %v637, 0
        %v742 = vsel %vm647, %v638, 0
        %744 = vmatpush.msra.mxu0 0.0
        %745 = vmatpush.msra.mxu0 0.0
        %746 = vmatpush.msra.mxu0 0.0
        %747 = vmatpush.msra.mxu0 0.0
        %748 = vmatpush.msra.mxu0 0.0
        %749 = vmatpush.msra.mxu0 0.0
        %750 = vmatpush.msra.mxu0 0.0
        %751 = vmatpush.msra.mxu0 0.0
        %752 = vmatpush.msra.mxu0 0.0
        %753 = vmatpush.msra.mxu0 0.0
        %754 = vmatpush.msra.mxu0 0.0
        %755 = vmatpush.msra.mxu0 0.0
        %756 = vmatpush.msra.mxu0 %v642
        %757 = vmatpush.msra.mxu0 %v641
        %758 = vmatpush.msra.mxu0 %v640
        %759 = vmatpush.msra.mxu0 %v639
        %760 = vmatmul.f32.gmra.mxu0 %v649
        %v761 = vpop.f32.mrf.mxu0
        %v762 = vadd.f32 %v645, %v761
        %763 = vmatmul.f32.gmra.mxu0 %v652
        %v764 = vpop.f32.mrf.mxu0
        %v765 = vadd.f32 %v645, %v764
        %766 = vmatmul.f32.gmra.mxu0 %v655
        %v767 = vpop.f32.mrf.mxu0
        %v768 = vadd.f32 %v645, %v767
        %769 = vmatmul.f32.gmra.mxu0 %v658
        %v770 = vpop.f32.mrf.mxu0
        %v771 = vadd.f32 %v645, %v770
        %772 = vmatmul.f32.gmra.mxu0 %v661
        %v773 = vpop.f32.mrf.mxu0
        %v774 = vadd.f32 %v645, %v773
        %775 = vmatmul.f32.gmra.mxu0 %v664
        %v776 = vpop.f32.mrf.mxu0
        %v777 = vadd.f32 %v645, %v776
        %778 = vmatmul.f32.gmra.mxu0 %v667
        %v779 = vpop.f32.mrf.mxu0
        %v780 = vadd.f32 %v645, %v779
        %781 = vmatmul.f32.gmra.mxu0 %v670
        %v782 = vpop.f32.mrf.mxu0
        %v783 = vadd.f32 %v645, %v782
        %784 = vmatmul.f32.gmra.mxu0 %v673
        %v785 = vpop.f32.mrf.mxu0
        %v786 = vadd.f32 %v645, %v785
        %787 = vmatmul.f32.gmra.mxu0 %v676
        %v788 = vpop.f32.mrf.mxu0
        %v789 = vadd.f32 %v645, %v788
        %790 = vmatmul.f32.gmra.mxu0 %v679
        %v791 = vpop.f32.mrf.mxu0
        %v792 = vadd.f32 %v645, %v791
        %793 = vmatmul.f32.gmra.mxu0 %v682
        %v794 = vpop.f32.mrf.mxu0
        %v795 = vadd.f32 %v645, %v794
        %796 = vmatmul.f32.gmra.mxu0 %v685
        %v797 = vpop.f32.mrf.mxu0
        %v798 = vadd.f32 %v645, %v797
        %799 = vmatmul.f32.gmra.mxu0 %v688
        %v800 = vpop.f32.mrf.mxu0
        %v801 = vadd.f32 %v645, %v800
        %802 = vmatmul.f32.gmra.mxu0 %v691
        %v803 = vpop.f32.mrf.mxu0
        %v804 = vadd.f32 %v645, %v803
        %805 = vmatmul.f32.gmra.mxu0 %v694
        %v806 = vpop.f32.mrf.mxu0
        %v807 = vadd.f32 %v645, %v806
        %808 = vmatmul.f32.gmra.mxu0 %v697
        %v809 = vpop.f32.mrf.mxu0
        %v810 = vadd.f32 %v645, %v809
        %811 = vmatmul.f32.gmra.mxu0 %v700
        %v812 = vpop.f32.mrf.mxu0
        %v813 = vadd.f32 %v645, %v812
        %814 = vmatmul.f32.gmra.mxu0 %v703
        %v815 = vpop.f32.mrf.mxu0
        %v816 = vadd.f32 %v645, %v815
        %817 = vmatmul.f32.gmra.mxu0 %v706
        %v818 = vpop.f32.mrf.mxu0
        %v819 = vadd.f32 %v645, %v818
        %820 = vmatmul.f32.gmra.mxu0 %v709
        %v821 = vpop.f32.mrf.mxu0
        %v822 = vadd.f32 %v645, %v821
        %823 = vmatmul.f32.gmra.mxu0 %v712
        %v824 = vpop.f32.mrf.mxu0
        %v825 = vadd.f32 %v645, %v824
        %826 = vmatmul.f32.gmra.mxu0 %v715
        %v827 = vpop.f32.mrf.mxu0
        %v828 = vadd.f32 %v645, %v827
        %829 = vmatmul.f32.gmra.mxu0 %v718
        %v830 = vpop.f32.mrf.mxu0
        %v831 = vadd.f32 %v645, %v830
        %832 = vmatmul.f32.gmra.mxu0 %v721
        %v833 = vpop.f32.mrf.mxu0
        %v834 = vadd.f32 %v645, %v833
        %835 = vmatmul.f32.gmra.mxu0 %v724
        %v836 = vpop.f32.mrf.mxu0
        %v837 = vadd.f32 %v645, %v836
        %838 = vmatmul.f32.gmra.mxu0 %v727
        %v839 = vpop.f32.mrf.mxu0
        %v840 = vadd.f32 %v645, %v839
        %841 = vmatmul.f32.gmra.mxu0 %v730
        %v842 = vpop.f32.mrf.mxu0
        %v843 = vadd.f32 %v645, %v842
        %844 = vmatmul.f32.gmra.mxu0 %v733
        %v845 = vpop.f32.mrf.mxu0
        %v846 = vadd.f32 %v645, %v845
        %847 = vmatmul.f32.gmra.mxu0 %v736
        %v848 = vpop.f32.mrf.mxu0
        %v849 = vadd.f32 %v645, %v848
        %850 = vmatmul.f32.gmra.mxu0 %v739
        %v851 = vpop.f32.mrf.mxu0
        %v852 = vadd.f32 %v645, %v851
        %853 = vmatmul.f32.gmra.mxu0 %v742
        %v854 = vpop.f32.mrf.mxu0
        %v855 = vadd.f32 %v645, %v854
        %856 = vdwg.mxu0
        %857 = vxpose.xlu0.b32.start [1/16] %v762, 128
        %858 = vxpose.xlu0.b32.cont [2/16] %v765, 128
        %859 = vxpose.xlu0.b32.cont [3/16] %v768, 128
        %860 = vxpose.xlu0.b32.cont [4/16] %v771, 128
        %861 = vxpose.xlu0.b32.cont [5/16] %v774, 128
        %862 = vxpose.xlu0.b32.cont [6/16] %v777, 128
        %863 = vxpose.xlu0.b32.cont [7/16] %v780, 128
        %864 = vxpose.xlu0.b32.cont [8/16] %v783, 128
        %865 = vxpose.xlu0.b32.cont [9/16] %v786, 128
        %866 = vxpose.xlu0.b32.cont [10/16] %v789, 128
        %867 = vxpose.xlu0.b32.cont [11/16] %v792, 128
        %868 = vxpose.xlu0.b32.cont [12/16] %v795, 128
        %869 = vxpose.xlu0.b32.cont [13/16] %v798, 128
        %870 = vxpose.xlu0.b32.cont [14/16] %v801, 128
        %871 = vxpose.xlu0.b32.cont [15/16] %v804, 128
        %872 = vxpose.xlu0.b32.end [16/16] %v807, 128
        %v873 = vpop.trf.xlu0
        %v874 = vpop.trf.xlu0
        %v875 = vpop.trf.xlu0
        %v876 = vpop.trf.xlu0
        %v877 = vpop.trf.xlu0
        %v878 = vpop.trf.xlu0
        %v879 = vpop.trf.xlu0
        %v880 = vpop.trf.xlu0
        %v881 = vpop.trf.xlu0
        %v882 = vpop.trf.xlu0
        %v883 = vpop.trf.xlu0
        %v884 = vpop.trf.xlu0
        %v885 = vpop.trf.xlu0
        %v886 = vpop.trf.xlu0
        %v887 = vpop.trf.xlu0
        %v888 = vpop.trf.xlu0
        %889 = vxpose.xlu0.b32.start [1/16] %v810, 128
        %890 = vxpose.xlu0.b32.cont [2/16] %v813, 128
        %891 = vxpose.xlu0.b32.cont [3/16] %v816, 128
        %892 = vxpose.xlu0.b32.cont [4/16] %v819, 128
        %893 = vxpose.xlu0.b32.cont [5/16] %v822, 128
        %894 = vxpose.xlu0.b32.cont [6/16] %v825, 128
        %895 = vxpose.xlu0.b32.cont [7/16] %v828, 128
        %896 = vxpose.xlu0.b32.cont [8/16] %v831, 128
        %897 = vxpose.xlu0.b32.cont [9/16] %v834, 128
        %898 = vxpose.xlu0.b32.cont [10/16] %v837, 128
        %899 = vxpose.xlu0.b32.cont [11/16] %v840, 128
        %900 = vxpose.xlu0.b32.cont [12/16] %v843, 128
        %901 = vxpose.xlu0.b32.cont [13/16] %v846, 128
        %902 = vxpose.xlu0.b32.cont [14/16] %v849, 128
        %903 = vxpose.xlu0.b32.cont [15/16] %v852, 128
        %904 = vxpose.xlu0.b32.end [16/16] %v855, 128
        %v905 = vpop.trf.xlu0
        %v906 = vpop.trf.xlu0
        %v907 = vpop.trf.xlu0
        %v908 = vpop.trf.xlu0
        %v909 = vpop.trf.xlu0
        %v910 = vpop.trf.xlu0
        %v911 = vpop.trf.xlu0
        %v912 = vpop.trf.xlu0
        %v913 = vpop.trf.xlu0
        %v914 = vpop.trf.xlu0
        %v915 = vpop.trf.xlu0
        %v916 = vpop.trf.xlu0
        %v917 = vpop.trf.xlu0
        %v918 = vpop.trf.xlu0
        %v919 = vpop.trf.xlu0
        %v920 = vpop.trf.xlu0
        %s921 = smul.u32 %s33, 256
        %v922 = vlaneseq
        %v923 = vand.u32 %v922, 127
        %v924 = vadd.s32 %v923, 128
        %v925 = vstv %s921
        %v926 = vadd.s32 %v925, %v923
        %v927 = vadd.s32 %v925, %v924
        %vm928 = vcmp.lt.s32.totalorder %v926, 640
        %vm929 = vcmp.lt.s32.totalorder %v927, 640
        %v930 = vsel %vm928, %v873, -inf
        %v931 = vsel %vm929, %v905, -inf
        %v934 = vrot.slane %v931, 7
        %vm935 = vcmask 1040384
        %v936 = vsel %vm935, %v930, %v934
        %v938 = vlaneseq
        %vm939 = vcmp.ge.s32.totalorder %v938, 0
        %vm940 = vcmp.lt.s32.totalorder %v938, 256
        %vm941 = vmand %vm939, %vm940
        %942 = vst.msk [vmem:[%s395] sm:$0x3] %vm941, %v936
        %v943 = vld [vmem:[#allocation2] sm:$0x1]
        %v944 = vsel %vm935, %v930, -inf
        %v945 = vsel %vm935, %v931, -inf
        %v946 = vmax.f32 %v944, %v945
        %947 = vmax.xlane.f32.xlu0 %v946
        %v948 = vpop.xlane.xlu0 %947
        %v949 = vmax.f32 %v943, %v948
        %v950 = vsub.f32 %v943, %v949
        %v951 = vmul.f32 %v950, 1.442695
        %v952 = vpow.pop %v951
        %954 = vset.pattern.permute.xlu0 0
        %955 = vperm.xlu0 %954, %v949
        %v956 = vpop.permute.xlu0 %955
        %v958 = vperm.slane %v956, 0
        %v959 = vsub.f32 %v930, %v958
        %v960 = vsub.f32 %v931, %v958
        %v961 = vmul.f32 %v959, 1.442695
        %v962 = vpow.pop %v961
        %v963 = vmul.f32 %v960, 1.442695
        %v964 = vpow.pop %v963
        %v965 = vld [vmem:[#allocation3] sm:$0x1]
        %v966 = vmul.f32 %v952, %v965
        %v967 = vsel %vm935, %v962, 0.0
        %v968 = vsel %vm935, %v964, 0.0
        %v969 = vadd.f32 %v967, %v968
        %970 = vadd.xlane.f32.xlu0 %v969
        %v971 = vpop.xlane.xlu0 %970
        %v972 = vadd.f32 %v966, %v971
        %vm973 = vcmask 0
        %974 = vst.msk [vmem:[#allocation3] sm:$0x1] %vm973, %v972
        %v975 = vld [vmem:[#allocation4] sm:$0x1]
        %v976 = vmul.f32 %v952, %v975
        %1009 = vrot.lane.b32.xlu0 %v476, 96
        %v1010 = vpop.permute.xlu0 %1009
        %1011 = vrot.lane.b32.xlu0 %v479, 96
        %v1012 = vpop.permute.xlu0 %1011
        %1013 = vrot.lane.b32.xlu0 %v482, 96
        %v1014 = vpop.permute.xlu0 %1013
        %1015 = vrot.lane.b32.xlu0 %v485, 96
        %v1016 = vpop.permute.xlu0 %1015
        %1017 = vrot.lane.b32.xlu0 %v488, 96
        %v1018 = vpop.permute.xlu0 %1017
        %1019 = vrot.lane.b32.xlu0 %v491, 96
        %v1020 = vpop.permute.xlu0 %1019
        %1021 = vrot.lane.b32.xlu0 %v494, 96
        %v1022 = vpop.permute.xlu0 %1021
        %1023 = vrot.lane.b32.xlu0 %v497, 96
        %v1024 = vpop.permute.xlu0 %1023
        %1025 = vrot.lane.b32.xlu0 %v500, 96
        %v1026 = vpop.permute.xlu0 %1025
        %1027 = vrot.lane.b32.xlu0 %v503, 96
        %v1028 = vpop.permute.xlu0 %1027
        %1029 = vrot.lane.b32.xlu0 %v506, 96
        %v1030 = vpop.permute.xlu0 %1029
        %1031 = vrot.lane.b32.xlu0 %v509, 96
        %v1032 = vpop.permute.xlu0 %1031
        %1033 = vrot.lane.b32.xlu0 %v512, 96
        %v1034 = vpop.permute.xlu0 %1033
        %1035 = vrot.lane.b32.xlu0 %v515, 96
        %v1036 = vpop.permute.xlu0 %1035
        %1037 = vrot.lane.b32.xlu0 %v518, 96
        %v1038 = vpop.permute.xlu0 %1037
        %1039 = vrot.lane.b32.xlu0 %v521, 96
        %v1040 = vpop.permute.xlu0 %1039
        %1041 = vrot.lane.b32.xlu0 %v524, 96
        %v1042 = vpop.permute.xlu0 %1041
        %1043 = vrot.lane.b32.xlu0 %v527, 96
        %v1044 = vpop.permute.xlu0 %1043
        %1045 = vrot.lane.b32.xlu0 %v530, 96
        %v1046 = vpop.permute.xlu0 %1045
        %1047 = vrot.lane.b32.xlu0 %v533, 96
        %v1048 = vpop.permute.xlu0 %1047
        %1049 = vrot.lane.b32.xlu0 %v536, 96
        %v1050 = vpop.permute.xlu0 %1049
        %1051 = vrot.lane.b32.xlu0 %v539, 96
        %v1052 = vpop.permute.xlu0 %1051
        %1053 = vrot.lane.b32.xlu0 %v542, 96
        %v1054 = vpop.permute.xlu0 %1053
        %1055 = vrot.lane.b32.xlu0 %v545, 96
        %v1056 = vpop.permute.xlu0 %1055
        %1057 = vrot.lane.b32.xlu0 %v548, 96
        %v1058 = vpop.permute.xlu0 %1057
        %1059 = vrot.lane.b32.xlu0 %v551, 96
        %v1060 = vpop.permute.xlu0 %1059
        %1061 = vrot.lane.b32.xlu0 %v554, 96
        %v1062 = vpop.permute.xlu0 %1061
        %1063 = vrot.lane.b32.xlu0 %v557, 96
        %v1064 = vpop.permute.xlu0 %1063
        %1065 = vrot.lane.b32.xlu0 %v560, 96
        %v1066 = vpop.permute.xlu0 %1065
        %1067 = vrot.lane.b32.xlu0 %v563, 96
        %v1068 = vpop.permute.xlu0 %1067
        %1069 = vrot.lane.b32.xlu0 %v566, 96
        %v1070 = vpop.permute.xlu0 %1069
        %1071 = vrot.lane.b32.xlu0 %v569, 96
        %v1072 = vpop.permute.xlu0 %1071
        %1105 = vmatpush.msra.mxu0 %v1040
        %1106 = vmatpush.msra.mxu0 %v1038
        %1107 = vmatpush.msra.mxu0 %v1036
        %1108 = vmatpush.msra.mxu0 %v1034
        %1109 = vmatpush.msra.mxu0 %v1032
        %1110 = vmatpush.msra.mxu0 %v1030
        %1111 = vmatpush.msra.mxu0 %v1028
        %1112 = vmatpush.msra.mxu0 %v1026
        %1113 = vmatpush.msra.mxu0 %v1024
        %1114 = vmatpush.msra.mxu0 %v1022
        %1115 = vmatpush.msra.mxu0 %v1020
        %1116 = vmatpush.msra.mxu0 %v1018
        %1117 = vmatpush.msra.mxu0 %v1016
        %1118 = vmatpush.msra.mxu0 %v1014
        %1119 = vmatpush.msra.mxu0 %v1012
        %1120 = vmatpush.msra.mxu0 %v1010
        %1121 = vmatmul.f32.gmra.mxu0 %v962
        %v1122 = vpop.f32.mrf.mxu0
        %v1123 = vadd.f32 0.0, %v1122
        %1124 = vdwg.mxu0
        %1125 = vmatpush.msra.mxu0 %v1072
        %1126 = vmatpush.msra.mxu0 %v1070
        %1127 = vmatpush.msra.mxu0 %v1068
        %1128 = vmatpush.msra.mxu0 %v1066
        %1129 = vmatpush.msra.mxu0 %v1064
        %1130 = vmatpush.msra.mxu0 %v1062
        %1131 = vmatpush.msra.mxu0 %v1060
        %1132 = vmatpush.msra.mxu0 %v1058
        %1133 = vmatpush.msra.mxu0 %v1056
        %1134 = vmatpush.msra.mxu0 %v1054
        %1135 = vmatpush.msra.mxu0 %v1052
        %1136 = vmatpush.msra.mxu0 %v1050
        %1137 = vmatpush.msra.mxu0 %v1048
        %1138 = vmatpush.msra.mxu0 %v1046
        %1139 = vmatpush.msra.mxu0 %v1044
        %1140 = vmatpush.msra.mxu0 %v1042
        %1141 = vmatmul.f32.gmra.mxu0 %v964
        %v1142 = vpop.f32.mrf.mxu0
        %v1143 = vadd.f32 %v1123, %v1142
        %1144 = vdwg.mxu0
        %v1145 = vadd.f32 %v976, %v1143
        %1146 = vst.msk [vmem:[#allocation4] sm:$0x1] %vm973, %v1145
        %1147 = vst.msk [vmem:[#allocation2] sm:$0x1] %vm973, %v949
        %p1148 = scmp.eq.s32.totalorder %s33, 2
        // Predicated region
        $region57: #{tpu_custom_call.1} parent=47 // pred_check
          %p1149 = pneg %p1148
        $region58: #{tpu_custom_call.1} parent=47 // pred_check_branch
          %1151 = sbr.rel (%p1149) target = $region60
        $region59: #{tpu_custom_call.1} parent=47 // pred_region
          %v1152 = vld [vmem:[#allocation3] sm:$0x1]
          %v1153 = vrcp.pop %v1152
          %v1154 = vmul.f32 %v1152, %v1153
          %v1155 = vsub.f32 1.0, %v1154
          %v1156 = vmul.f32 %v1153, %v1155
          %v1157 = vadd.f32 %v1153, %v1156
          %vm1158 = vweird.f32 %v1152
          %vm1159 = vweird.f32 %v1153
          %vm1160 = vmor %vm1158, %vm1159
          %v1161 = vsel %vm1160, %v1153, %v1157
          %v1162 = vand.u32 2147483647, %v1152
          %vm1163 = vcmp.eq.f32.partialorder %v1162, 8.507059e+37
          %v1164 = vand.u32 %v1152, 2147483648
          %v1165 = vor.u32 1.1754944e-38, %v1164
          %v1166 = vsel %vm1163, %v1165, %v1161
          %v1167 = vld [vmem:[#allocation4] sm:$0x1]
          %v1168 = vmul.f32 %v1167, %v1166
          %v1169 = vld [vmem:[#allocation6] sm:$0x1]
          %v1170 = vadd.f32 %v1168, %v1169
          %v1171 = vxor.u32 %v1170, 2147483648
          %v1172 = vmul.f32 %v1171, 1.442695
          %v1173 = vpow.pop %v1172
          %v1174 = vadd.f32 %v1173, 1.0
          %v1175 = vrcp.pop %v1174
          %v1176 = vmul.f32 %v1174, %v1175
          %v1177 = vsub.f32 1.0, %v1176
          %v1178 = vmul.f32 %v1175, %v1177
          %v1179 = vadd.f32 %v1175, %v1178
          %vm1180 = vweird.f32 %v1174
          %vm1181 = vweird.f32 %v1175
          %vm1182 = vmor %vm1180, %vm1181
          %v1183 = vsel %vm1182, %v1175, %v1179
          %v1184 = vand.u32 2147483647, %v1174
          %vm1185 = vcmp.eq.f32.partialorder %v1184, 8.507059e+37
          %v1186 = vand.u32 %v1174, 2147483648
          %v1187 = vor.u32 1.1754944e-38, %v1186
          %v1188 = vsel %vm1185, %v1187, %v1183
          %v1189 = vmul.f32 1.0, %v1188
          %1190 = vst.msk [vmem:[#allocation10] sm:$0x1] %vm973, %v1189
          %vm1191 = vcmp.ge.f32.partialorder %v1189, 0.5
          %v1192 = vsel %vm1191, 1, 0
          %v1193 = vcvt.s32.f32 %v1192
          %1194 = vst.msk [vmem:[#allocation11] sm:$0x1] %vm973, %v1193
          %v1195 = vld [vmem:[#allocation2] sm:$0x1]
          %1196 = vst.msk [vmem:[#allocation14] sm:$0x1] %vm973, %v1195
          %v1197 = vld [vmem:[#allocation3] sm:$0x1]
          %1198 = vst.msk [vmem:[#allocation15] sm:$0x1] %vm973, %v1197
        $region60: #{tpu_custom_call.1} parent=47 // pred_fallthru
          _
        %s1199 = sand.u32 %s33, 1
        %s1200 = scalar_lea.sflag [#allocation9], %s1199
        %s1201 = sand.u32 %s235, 1
        %s1202 = smul.addr %s1201, 2
        %s1203 = scalar_lea.vmem [#allocation13], %s1202
        // Predicated region
        $region61: #{tpu_custom_call.1} parent=47 // pred_check
          %p1204 = pneg %p198
        $region62: #{tpu_custom_call.1} parent=47 // pred_check_branch
          %1206 = sbr.rel (%p1204) target = $region64
        $region63: #{tpu_custom_call.1} parent=47 // pred_region
          %1208 = vsyncadd [#allocation9], 0
          %s1210 = sshll.u32 [#allocation10], 4
          %s1211 = int_to_ptr.vmem [resolvable:$true] %s1210
          %s1212 = sshll.u32 %s7, 4
          %s1213 = int_to_ptr.hbm [resolvable:$true] %s1212
          %1215 = dma.vmem_to_hbm [thread:$0]  %s1211, 16, %s1213, [#allocation9]
        $region64: #{tpu_custom_call.1} parent=47 // pred_fallthru
          _
        // Predicated region
        $region65: #{tpu_custom_call.1} parent=47 // pred_check
          %p1216 = pneg %p219
        $region66: #{tpu_custom_call.1} parent=47 // pred_check_branch
          %1218 = sbr.rel (%p1216) target = $region68
        $region67: #{tpu_custom_call.1} parent=47 // pred_region
          %1220 = vsyncadd [#allocation12], 0
          %s1222 = sshll.u32 [#allocation11], 4
          %s1223 = int_to_ptr.vmem [resolvable:$true] %s1222
          %s1224 = sshll.u32 %s8, 4
          %s1225 = int_to_ptr.hbm [resolvable:$true] %s1224
          %1227 = dma.vmem_to_hbm [thread:$0]  %s1223, 16, %s1225, [#allocation12]
        $region68: #{tpu_custom_call.1} parent=47 // pred_fallthru
          _
        // Predicated region
        $region69: #{tpu_custom_call.1} parent=47 // pred_check
          %p1228 = pneg %p245
        $region70: #{tpu_custom_call.1} parent=47 // pred_check_branch
          %1230 = sbr.rel (%p1228) target = $region72
        $region71: #{tpu_custom_call.1} parent=47 // pred_region
          %s1231 = smul.u32 2, %s33
          %1233 = vsyncadd %s1200, 0
          %s1234 = scalar_lea.hbm %s9, %s1231
          %s1236 = sshll.u32 %s1203, 4
          %s1237 = int_to_ptr.vmem [resolvable:$true] %s1236
          %s1238 = sshll.u32 %s1234, 4
          %s1239 = int_to_ptr.hbm [resolvable:$true] %s1238
          %1241 = dma.vmem_to_hbm [thread:$0]  %s1237, 32, %s1239, %s1200
        $region72: #{tpu_custom_call.1} parent=47 // pred_fallthru
          _
        // Predicated region
        $region73: #{tpu_custom_call.1} parent=47 // pred_check
          %p1242 = pneg %p266
        $region74: #{tpu_custom_call.1} parent=47 // pred_check_branch
          %1244 = sbr.rel (%p1242) target = $region76
        $region75: #{tpu_custom_call.1} parent=47 // pred_region
          %1246 = vsyncadd [#allocation12], 0
          %s1248 = sshll.u32 [#allocation14], 4
          %s1249 = int_to_ptr.vmem [resolvable:$true] %s1248
          %s1250 = sshll.u32 %s10, 4
          %s1251 = int_to_ptr.hbm [resolvable:$true] %s1250
          %1253 = dma.vmem_to_hbm [thread:$0]  %s1249, 16, %s1251, [#allocation12]
        $region76: #{tpu_custom_call.1} parent=47 // pred_fallthru
          _
        // Predicated region
        $region77: #{tpu_custom_call.1} parent=47 // pred_check
          %p1254 = pneg %p287
        $region78: #{tpu_custom_call.1} parent=47 // pred_check_branch
          %1256 = sbr.rel (%p1254) target = $region80
        $region79: #{tpu_custom_call.1} parent=47 // pred_region
          %1258 = vsyncadd [#allocation16], 0
          %s1260 = sshll.u32 [#allocation15], 4
          %s1261 = int_to_ptr.vmem [resolvable:$true] %s1260
          %s1262 = sshll.u32 %s11, 4
          %s1263 = int_to_ptr.hbm [resolvable:$true] %s1262
          %1265 = dma.vmem_to_hbm [thread:$0]  %s1261, 16, %s1263, [#allocation16]
        $region80: #{tpu_custom_call.1} parent=47 // pred_fallthru
          _
        // Predicated region
        $region81: #{tpu_custom_call.1} parent=47 // pred_check
          %p1266 = pneg %p198
        $region82: #{tpu_custom_call.1} parent=47 // pred_check_branch
          %1268 = sbr.rel (%p1266) target = $region84
        $region83: #{tpu_custom_call.1} parent=47 // pred_region
          %1270 = dma.done [#allocation9], 16
        $region84: #{tpu_custom_call.1} parent=47 // pred_fallthru
          _
        // Predicated region
        $region85: #{tpu_custom_call.1} parent=47 // pred_check
          %p1271 = pneg %p219
        $region86: #{tpu_custom_call.1} parent=47 // pred_check_branch
          %1273 = sbr.rel (%p1271) target = $region88
        $region87: #{tpu_custom_call.1} parent=47 // pred_region
          %1275 = dma.done [#allocation12], 16
        $region88: #{tpu_custom_call.1} parent=47 // pred_fallthru
          _
        // Predicated region
        $region89: #{tpu_custom_call.1} parent=47 // pred_check
          %p1276 = pneg %p266
        $region90: #{tpu_custom_call.1} parent=47 // pred_check_branch
          %1278 = sbr.rel (%p1276) target = $region92
        $region91: #{tpu_custom_call.1} parent=47 // pred_region
          %1280 = dma.done [#allocation12], 16
        $region92: #{tpu_custom_call.1} parent=47 // pred_fallthru
          _
        // Predicated region
        $region93: #{tpu_custom_call.1} parent=47 // pred_check
          %p1281 = pneg %p287
        $region94: #{tpu_custom_call.1} parent=47 // pred_check_branch
          %1283 = sbr.rel (%p1281) target = $region96
        $region95: #{tpu_custom_call.1} parent=47 // pred_region
          %1285 = dma.done [#allocation16], 16
        $region96: #{tpu_custom_call.1} parent=47 // pred_fallthru
          _
      $region48: #{tpu_custom_call.1} parent=5 // pred_fallthru
        _
      %p1286 = scmp.le.s32.totalorder 2, %s28
      // Predicated region
      $region97: #{tpu_custom_call.1} parent=5 // pred_check
        %p1287 = pneg %p1286
      $region98: #{tpu_custom_call.1} parent=5 // pred_check_branch
        %1289 = sbr.rel (%p1287) target = $region100
      $region99: #{tpu_custom_call.1} parent=5 // pred_region
        %s1290 = ssub.s32 %s28, 2
        // Predicated region
        $region101: #{tpu_custom_call.1} parent=99 // pred_check
          %p1291 = pneg %p251
        $region102: #{tpu_custom_call.1} parent=99 // pred_check_branch
          %1293 = sbr.rel (%p1291) target = $region104
        $region103: #{tpu_custom_call.1} parent=99 // pred_region
          %s1294 = sand.u32 %s34, 1
          %s1295 = scalar_lea.sflag [#allocation9], %s1294
          %s1296 = sand.u32 %s236, 1
          %s1297 = smul.addr %s1296, 2
          %s1298 = scalar_lea.vmem [#allocation13], %s1297
          %1300 = dma.done %s1295, 32
        $region104: #{tpu_custom_call.1} parent=99 // pred_fallthru
          _
      $region100: #{tpu_custom_call.1} parent=5 // pred_fallthru
        _
    $region6: #{tpu_custom_call.1} parent=1 // loop_footer
      %s32 = sadd.s32 1, %s28
    $region7: #{tpu_custom_call.1} parent=1 // loop_footer_branch
      %27 = sbr.rel target = $region3
    $region8: #{tpu_custom_call.1} parent=1 // loop_exit
      _
    %1301 = vsyncpa [#allocation8], 1
    %s1302 = scalar_lea.sflag [#allocation8], 1
    %1303 = vsyncpa %s1302, 1
    %1304 = vsyncpa [#allocation9], 1
    %s1305 = scalar_lea.sflag [#allocation9], 1
    %1306 = vsyncpa %s1305, 1
    %1307 = vsyncpa [#allocation12], 1
    %1308 = vsyncpa [#allocation16], 1

</llo_original>
